<compile_context>
chip_gen: v7x
topology: tpu7x:2x2x1
jax: 0.10.0
libtpu: 0.0.40
codegen_flags: <defaults>
</compile_context>

<pallas_src>
import math
import functools

import jax
import jax.numpy as jnp
from jax import lax
from jax.experimental import pallas as pl
from jax.experimental.pallas import tpu as pltpu


def _mha_kernel(x_ref, wq_ref, wk_ref, wv_ref, wo_ref,
                bq_ref, bk_ref, bv_ref, bo_ref,
                out_ref, attn_ref,
                k_sc, v_sc,
                *, num_heads, d_k, tq):
    """Grid = (batch, num_q_tiles).  One step handles one (batch, query-tile)
    pair and loops over all heads with a static (unrolled) loop."""
    i_q = pl.program_id(1)

    # ---- once per batch element: full-width K / V projections (all heads) ----
    # (S, D) x (D, D) matmuls: MXU output is D lanes wide instead of d_k, and
    # K/V are NOT recomputed for every query tile (scratch persists across i_q).
    @pl.when(i_q == 0)
    def _():
        x_all = x_ref[0]                                               # (S, D) bf16
        k_sc[...] = (jnp.dot(x_all, wk_ref[...],
                             preferred_element_type=jnp.float32)
                     + bk_ref[...]).astype(jnp.bfloat16)
        v_sc[...] = (jnp.dot(x_all, wv_ref[...],
                             preferred_element_type=jnp.float32)
                     + bv_ref[...]).astype(jnp.bfloat16)

    # ---- per query tile: full-width Q projection (1/sqrt(d_k) pre-folded) ----
    row0 = pl.multiple_of(i_q * tq, tq)
    x_q = x_ref[0, pl.ds(row0, tq), :]                                 # (tq, D) bf16
    q = (jnp.dot(x_q, wq_ref[...], preferred_element_type=jnp.float32)
         + bq_ref[...]).astype(jnp.bfloat16)                           # (tq, D)

    k = k_sc[...]                                                      # (S, D) bf16
    v = v_sc[...]                                                      # (S, D) bf16

    # ---- per-head attention; static unroll => all lane slices are static ----
    # TODO(synk): for very large head counts an in-kernel fori_loop (or a head
    #             grid axis) would bound live ranges better, at the cost of
    #             dynamic lane slicing of the (., D) activations.
    acc = None
    for h in range(num_heads):
        sl = slice(h * d_k, (h + 1) * d_k)
        q_h = q[:, sl]                                                 # (tq, d_k)
        k_h = k[:, sl]                                                 # (S,  d_k)
        v_h = v[:, sl]                                                 # (S,  d_k)

        # scores = q_h @ k_h^T  (NT dot_general, bf16 operands, f32 accumulate)
        s = lax.dot_general(q_h, k_h, (((1,), (1,)), ((), ())),
                            preferred_element_type=jnp.float32)        # (tq, S)

        # Numerically-stable softmax in f32; divide -> EUP reciprocal.
        # (approx=True: ~1e-3 row-sum deviation, below the bf16 writeback
        #  quantization — precision contract documented in the wrapper.)
        s = s - jnp.max(s, axis=-1, keepdims=True)
        e = jnp.exp(s)
        a = e * pl.reciprocal(jnp.sum(e, axis=-1, keepdims=True), approx=True)

        a_bf = a.astype(jnp.bfloat16)
        attn_ref[0, h] = a_bf                      # bf16 (tq, S) lane-dense store

        ctx = jnp.dot(a_bf, v_h, preferred_element_type=jnp.float32)   # (tq, d_k)
        contrib = jnp.dot(ctx.astype(jnp.bfloat16), wo_ref[sl, :],
                          preferred_element_type=jnp.float32)          # (tq, D)
        acc = contrib if acc is None else acc + contrib

    # Output-projection bias added exactly once, single write per (b, q-tile).
    out_ref[0] = (acc + bo_ref[...]).astype(out_ref.dtype)


def _pick_q_tile(seq_len, max_tile=512):
    """Largest query tile <= max_tile that divides seq_len (full S if small)."""
    if seq_len <= max_tile:
        return seq_len
    for tq in (512, 256, 128, 64, 32, 16, 8):
        if seq_len % tq == 0:
            return tq
    # TODO(synk): non-divisible sequence lengths would need a masked edge tile.
    return seq_len


def _vmem_limit_bytes():
    """Per-generation VMEM limit (~80% of physical), with a safe fallback."""
    try:
        cap = pltpu.get_tpu_info().vmem_capacity_bytes
    except Exception:
        cap = 64 * 1024 * 1024
    return int(cap * 0.8)


def multi_head_attention(x, params, num_heads):
    """x: (B, S, D) float32.  params: (D, D) weights stored as (d_in, d_out)
    (already transposed for x @ W) and (1, D) biases.

    Returns (output f32 (B, S, D), attn_weights bf16 (B, H, S, S)).
    Precision contract: matmul operands are bf16 with f32 accumulation, and the
    attention weights are written back in bf16 (dominant HBM traffic)."""
    B, S, D = x.shape
    assert D % num_heads == 0, "d_model must be divisible by num_heads"
    d_k = D // num_heads

    tq = _pick_q_tile(S)
    assert S % tq == 0 and (tq % 8 == 0 or tq == S)
    num_q_tiles = S // tq

    scale = 1.0 / math.sqrt(d_k)

    # bf16 operands for the MXU (halves weight/activation DMA bytes); the
    # 1/sqrt(d_k) score scale is folded into Wq and bq (one-time wrapper op).
    x_bf = x.astype(jnp.bfloat16)
    wq = (params["wq"] * scale).astype(jnp.bfloat16)
    wk = params["wk"].astype(jnp.bfloat16)
    wv = params["wv"].astype(jnp.bfloat16)
    wo = params["wo"].astype(jnp.bfloat16)
    bq = params["bq"] * scale                         # f32
    bk = params["bk"]
    bv = params["bv"]
    bo = params["bo"]

    kernel = functools.partial(_mha_kernel, num_heads=num_heads, d_k=d_k, tq=tq)

    # Weights/biases VMEM-resident: constant index_map => DMA'd once, not per b.
    w_spec = pl.BlockSpec((D, D), lambda b, q: (0, 0))
    b_spec = pl.BlockSpec((1, D), lambda b, q: (0, 0))

    out_shapes = (
        jax.ShapeDtypeStruct((B, S, D), jnp.float32),
        jax.ShapeDtypeStruct((B, num_heads, S, S), jnp.bfloat16),
    )

    return pl.pallas_call(
        kernel,
        out_shape=out_shapes,
        grid_spec=pltpu.PrefetchScalarGridSpec(
            num_scalar_prefetch=0,
            grid=(B, num_q_tiles),
            in_specs=[
                pl.BlockSpec((1, S, D), lambda b, q: (b, 0, 0)),   # x (once per b)
                w_spec, w_spec, w_spec, w_spec,                     # wq wk wv wo
                b_spec, b_spec, b_spec, b_spec,                     # bq bk bv bo
            ],
            out_specs=[
                pl.BlockSpec((1, tq, D), lambda b, q: (b, q, 0)),               # out
                pl.BlockSpec((1, num_heads, tq, S), lambda b, q: (b, 0, q, 0)),  # attn
            ],
            scratch_shapes=[
                pltpu.VMEM((S, D), jnp.bfloat16),   # K (all heads, current batch elem)
                pltpu.VMEM((S, D), jnp.bfloat16),   # V
            ],
        ),
        compiler_params=pltpu.CompilerParams(
            dimension_semantics=("parallel", "arbitrary"),
            vmem_limit_bytes=_vmem_limit_bytes(),
        ),
    )(x_bf, wq, wk, wv, wo, bq, bk, bv, bo)


def init_params(key, d_model):
    """Deterministic nn.Linear-style init: U(-1/sqrt(fan_in), 1/sqrt(fan_in)).
    Weights stored as (d_in, d_out) (already transposed for x @ W)."""
    bound = 1.0 / math.sqrt(d_model)
    keys = jax.random.split(key, 8)
    p = {}
    for i, name in enumerate(["q", "k", "v", "o"]):
        p[f"w{name}"] = jax.random.uniform(
            keys[2 * i], (d_model, d_model), jnp.float32, -bound, bound)
        p[f"b{name}"] = jax.random.uniform(
            keys[2 * i + 1], (1, d_model), jnp.float32, -bound, bound)
    return p


def reference_mha(x, params, num_heads):
    """Plain-JAX f32 reference mirroring the PyTorch forward."""
    B, S, D = x.shape
    d_k = D // num_heads
    q = x @ params["wq"] + params["bq"]
    k = x @ params["wk"] + params["bk"]
    v = x @ params["wv"] + params["bv"]

    def split(t):
        return t.reshape(B, S, num_heads, d_k).transpose(0, 2, 1, 3)

    q, k, v = split(q), split(k), split(v)
    scores = jnp.einsum("bhqd,bhkd->bhqk", q, k) / math.sqrt(d_k)
    attn = jax.nn.softmax(scores, axis=-1)
    out = jnp.einsum("bhqk,bhkd->bhqd", attn, v)
    out = out.transpose(0, 2, 1, 3).reshape(B, S, D)
    out = out @ params["wo"] + params["bo"]
    return out, attn


if __name__ == "__main__":
    batch, seq_len, d_model, num_heads = 2, 8, 32, 4

    key = jax.random.PRNGKey(0)
    kx, kp = jax.random.split(key)
    x = jax.random.normal(kx, (batch, seq_len, d_model), jnp.float32)
    params = init_params(kp, d_model)

    out, attn = multi_head_attention(x, params, num_heads)
    out, attn = jax.block_until_ready((out, attn))

    ref_out, ref_attn = reference_mha(x, params, num_heads)
    # bf16 matmul operands (f32 accumulation) + bf16 attn writeback => 2e-2 tol.
    assert jnp.allclose(out, ref_out, rtol=2e-2, atol=2e-2), "output mismatch"
    assert jnp.allclose(attn.astype(jnp.float32), ref_attn,
                        rtol=2e-2, atol=2e-2), "attn mismatch"

    print("KERNEL_OK")
</pallas_src>

<mosaic_0001>
module attributes {stable_mosaic.version = 11 : i64} {
  func.func @_mha_kernel(%arg0: i32, %arg1: i32, %arg2: memref<1x8x32xbf16, #tpu.memory_space<vmem>>, %arg3: memref<32x32xbf16, #tpu.memory_space<vmem>>, %arg4: memref<32x32xbf16, #tpu.memory_space<vmem>>, %arg5: memref<32x32xbf16, #tpu.memory_space<vmem>>, %arg6: memref<32x32xbf16, #tpu.memory_space<vmem>>, %arg7: memref<1x32xf32, #tpu.memory_space<vmem>>, %arg8: memref<1x32xf32, #tpu.memory_space<vmem>>, %arg9: memref<1x32xf32, #tpu.memory_space<vmem>>, %arg10: memref<1x32xf32, #tpu.memory_space<vmem>>, %arg11: memref<1x8x32xf32, #tpu.memory_space<vmem>>, %arg12: memref<1x4x8x8xbf16, #tpu.memory_space<vmem>>, %arg13: memref<8x32xbf16, #tpu.memory_space<vmem>>, %arg14: memref<8x32xbf16, #tpu.memory_space<vmem>>) attributes {dimension_semantics = [#tpu.dimension_semantics<parallel>, #tpu.dimension_semantics<arbitrary>], iteration_bounds = array<i64: 2, 1>, scalar_prefetch = 0 : i64, scratch_operands = 2 : i64, tpu.core_type = #tpu.core_type<tc>, window_params = [{transform_indices = @transform_0, window_bounds = array<i64: 1, 8, 32>}, {pipeline_mode = #tpu.pipeline_mode<synchronous>, transform_indices = @transform_1, window_bounds = array<i64: 32, 32>}, {pipeline_mode = #tpu.pipeline_mode<synchronous>, transform_indices = @transform_2, window_bounds = array<i64: 32, 32>}, {pipeline_mode = #tpu.pipeline_mode<synchronous>, transform_indices = @transform_3, window_bounds = array<i64: 32, 32>}, {pipeline_mode = #tpu.pipeline_mode<synchronous>, transform_indices = @transform_4, window_bounds = array<i64: 32, 32>}, {pipeline_mode = #tpu.pipeline_mode<synchronous>, transform_indices = @transform_5, window_bounds = array<i64: 1, 32>}, {pipeline_mode = #tpu.pipeline_mode<synchronous>, transform_indices = @transform_6, window_bounds = array<i64: 1, 32>}, {pipeline_mode = #tpu.pipeline_mode<synchronous>, transform_indices = @transform_7, window_bounds = array<i64: 1, 32>}, {pipeline_mode = #tpu.pipeline_mode<synchronous>, transform_indices = @transform_8, window_bounds = array<i64: 1, 32>}, {transform_indices = @transform_9, window_bounds = array<i64: 1, 8, 32>}, {transform_indices = @transform_10, window_bounds = array<i64: 1, 4, 8, 8>}]} {
    %c0_i32 = arith.constant 0 : i32
    %0 = arith.cmpi eq, %arg1, %c0_i32 : i32
    %1 = arith.extui %0 : i1 to i32
    %c0_i32_0 = arith.constant 0 : i32
    %2 = arith.cmpi ne, %1, %c0_i32_0 : i32
    scf.if %2 {
      %c0_53 = arith.constant 0 : index
      %c0_54 = arith.constant 0 : index
      %c0_55 = arith.constant 0 : index
      %113 = vector.load %arg2[%c0_53, %c0_54, %c0_55] : memref<1x8x32xbf16, #tpu.memory_space<vmem>>, vector<1x8x32xbf16>
      %114 = vector.shape_cast %113 : vector<1x8x32xbf16> to vector<8x32xbf16>
      %c0_56 = arith.constant 0 : index
      %c0_57 = arith.constant 0 : index
      %115 = vector.load %arg4[%c0_56, %c0_57] : memref<32x32xbf16, #tpu.memory_space<vmem>>, vector<32x32xbf16>
      %cst_58 = arith.constant dense<0.000000e+00> : vector<8x32xf32>
      %116 = tpu.matmul %114, %115, %cst_58 {dimension_numbers = #tpu.dot_dimension_numbers<[1], [0], [0], [1], [0, 0, 1, 1], [], []>} : vector<8x32xbf16>, vector<32x32xbf16>, vector<8x32xf32> -> vector<8x32xf32>
      %c0_59 = arith.constant 0 : index
      %c0_60 = arith.constant 0 : index
      %117 = vector.load %arg8[%c0_59, %c0_60] : memref<1x32xf32, #tpu.memory_space<vmem>>, vector<1x32xf32>
      %118 = vector.broadcast %117 : vector<1x32xf32> to vector<8x32xf32>
      %119 = arith.addf %116, %118 : vector<8x32xf32>
      %120 = arith.truncf %119 : vector<8x32xf32> to vector<8x32xbf16>
      %c0_61 = arith.constant 0 : index
      %c0_62 = arith.constant 0 : index
      %121 = vector.load %arg13[%c0_61, %c0_62] : memref<8x32xbf16, #tpu.memory_space<vmem>>, vector<8x32xbf16>
      tpu.vector_store %arg13[%c0_61, %c0_62], %120 {strides = array<i32>} : memref<8x32xbf16, #tpu.memory_space<vmem>>, vector<8x32xbf16>,
      %c0_63 = arith.constant 0 : index
      %c0_64 = arith.constant 0 : index
      %122 = vector.load %arg5[%c0_63, %c0_64] : memref<32x32xbf16, #tpu.memory_space<vmem>>, vector<32x32xbf16>
      %cst_65 = arith.constant dense<0.000000e+00> : vector<8x32xf32>
      %123 = tpu.matmul %114, %122, %cst_65 {dimension_numbers = #tpu.dot_dimension_numbers<[1], [0], [0], [1], [0, 0, 1, 1], [], []>} : vector<8x32xbf16>, vector<32x32xbf16>, vector<8x32xf32> -> vector<8x32xf32>
      %c0_66 = arith.constant 0 : index
      %c0_67 = arith.constant 0 : index
      %124 = vector.load %arg9[%c0_66, %c0_67] : memref<1x32xf32, #tpu.memory_space<vmem>>, vector<1x32xf32>
      %125 = vector.broadcast %124 : vector<1x32xf32> to vector<8x32xf32>
      %126 = arith.addf %123, %125 : vector<8x32xf32>
      %127 = arith.truncf %126 : vector<8x32xf32> to vector<8x32xbf16>
      %c0_68 = arith.constant 0 : index
      %c0_69 = arith.constant 0 : index
      %128 = vector.load %arg14[%c0_68, %c0_69] : memref<8x32xbf16, #tpu.memory_space<vmem>>, vector<8x32xbf16>
      tpu.vector_store %arg14[%c0_68, %c0_69], %127 {strides = array<i32>} : memref<8x32xbf16, #tpu.memory_space<vmem>>, vector<8x32xbf16>,
    } else {
    }
    %c8_i32 = arith.constant 8 : i32
    %3 = arith.muli %arg1, %c8_i32 : i32
    %4 = tpu.assume_multiple %3, 8 : i32
    %c0 = arith.constant 0 : index
    %5 = arith.index_cast %4 : i32 to index
    %c0_1 = arith.constant 0 : index
    %6 = vector.load %arg2[%c0, %5, %c0_1] : memref<1x8x32xbf16, #tpu.memory_space<vmem>>, vector<1x8x32xbf16>
    %7 = vector.shape_cast %6 : vector<1x8x32xbf16> to vector<8x32xbf16>
    %c0_2 = arith.constant 0 : index
    %c0_3 = arith.constant 0 : index
    %8 = vector.load %arg3[%c0_2, %c0_3] : memref<32x32xbf16, #tpu.memory_space<vmem>>, vector<32x32xbf16>
    %cst = arith.constant dense<0.000000e+00> : vector<8x32xf32>
    %9 = tpu.matmul %7, %8, %cst {dimension_numbers = #tpu.dot_dimension_numbers<[1], [0], [0], [1], [0, 0, 1, 1], [], []>} : vector<8x32xbf16>, vector<32x32xbf16>, vector<8x32xf32> -> vector<8x32xf32>
    %c0_4 = arith.constant 0 : index
    %c0_5 = arith.constant 0 : index
    %10 = vector.load %arg7[%c0_4, %c0_5] : memref<1x32xf32, #tpu.memory_space<vmem>>, vector<1x32xf32>
    %11 = vector.broadcast %10 : vector<1x32xf32> to vector<8x32xf32>
    %12 = arith.addf %9, %11 : vector<8x32xf32>
    %13 = arith.truncf %12 : vector<8x32xf32> to vector<8x32xbf16>
    %c0_6 = arith.constant 0 : index
    %c0_7 = arith.constant 0 : index
    %14 = vector.load %arg13[%c0_6, %c0_7] : memref<8x32xbf16, #tpu.memory_space<vmem>>, vector<8x32xbf16>
    %c0_8 = arith.constant 0 : index
    %c0_9 = arith.constant 0 : index
    %15 = vector.load %arg14[%c0_8, %c0_9] : memref<8x32xbf16, #tpu.memory_space<vmem>>, vector<8x32xbf16>
    %16 = vector.extract_strided_slice %13 {offsets = [0, 0], sizes = [8, 8], strides = [1, 1]} : vector<8x32xbf16> to vector<8x8xbf16>
    %17 = vector.extract_strided_slice %14 {offsets = [0, 0], sizes = [8, 8], strides = [1, 1]} : vector<8x32xbf16> to vector<8x8xbf16>
    %18 = vector.extract_strided_slice %15 {offsets = [0, 0], sizes = [8, 8], strides = [1, 1]} : vector<8x32xbf16> to vector<8x8xbf16>
    %cst_10 = arith.constant dense<0.000000e+00> : vector<8x8xf32>
    %19 = tpu.matmul %16, %17, %cst_10 {dimension_numbers = #tpu.dot_dimension_numbers<[1], [1], [0], [0], [0, 0, 1, 0], [], []>} : vector<8x8xbf16>, vector<8x8xbf16>, vector<8x8xf32> -> vector<8x8xf32>
    %cst_11 = arith.constant dense<0xFF800000> : vector<8xf32>
    %20 = vector.multi_reduction <maximumf>, %19, %cst_11 [1] : vector<8x8xf32> to vector<8xf32>
    %21 = vector.shape_cast %20 : vector<8xf32> to vector<8x1xf32>
    %22 = vector.broadcast %21 : vector<8x1xf32> to vector<8x8xf32>
    %23 = arith.subf %19, %22 : vector<8x8xf32>
    %24 = math.exp %23 : vector<8x8xf32>
    %cst_12 = arith.constant dense<0.000000e+00> : vector<8xf32>
    %25 = vector.multi_reduction <add>, %24, %cst_12 [1] : vector<8x8xf32> to vector<8xf32>
    %26 = vector.shape_cast %25 : vector<8xf32> to vector<8x1xf32>
    %27 = tpu.reciprocal %26 {approx = true} : vector<8x1xf32> -> vector<8x1xf32>
    %28 = vector.broadcast %27 : vector<8x1xf32> to vector<8x8xf32>
    %29 = arith.mulf %24, %28 : vector<8x8xf32>
    %30 = arith.truncf %29 : vector<8x8xf32> to vector<8x8xbf16>
    %c0_13 = arith.constant 0 : index
    %c0_14 = arith.constant 0 : index
    %c0_15 = arith.constant 0 : index
    %c0_16 = arith.constant 0 : index
    %31 = vector.load %arg12[%c0_13, %c0_14, %c0_15, %c0_16] : memref<1x4x8x8xbf16, #tpu.memory_space<vmem>>, vector<1x1x8x8xbf16>
    %32 = vector.shape_cast %31 : vector<1x1x8x8xbf16> to vector<8x8xbf16>
    %33 = vector.shape_cast %30 : vector<8x8xbf16> to vector<1x1x8x8xbf16>
    tpu.vector_store %arg12[%c0_13, %c0_14, %c0_15, %c0_16], %33 {strides = array<i32>} : memref<1x4x8x8xbf16, #tpu.memory_space<vmem>>, vector<1x1x8x8xbf16>,
    %cst_17 = arith.constant dense<0.000000e+00> : vector<8x8xf32>
    %34 = tpu.matmul %30, %18, %cst_17 {dimension_numbers = #tpu.dot_dimension_numbers<[1], [0], [0], [1], [0, 0, 1, 1], [], []>} : vector<8x8xbf16>, vector<8x8xbf16>, vector<8x8xf32> -> vector<8x8xf32>
    %35 = arith.truncf %34 : vector<8x8xf32> to vector<8x8xbf16>
    %c0_18 = arith.constant 0 : index
    %c0_19 = arith.constant 0 : index
    %36 = vector.load %arg6[%c0_18, %c0_19] : memref<32x32xbf16, #tpu.memory_space<vmem>>, vector<8x32xbf16>
    %cst_20 = arith.constant dense<0.000000e+00> : vector<8x32xf32>
    %37 = tpu.matmul %35, %36, %cst_20 {dimension_numbers = #tpu.dot_dimension_numbers<[1], [0], [0], [1], [0, 0, 1, 1], [], []>} : vector<8x8xbf16>, vector<8x32xbf16>, vector<8x32xf32> -> vector<8x32xf32>
    %38 = vector.extract_strided_slice %13 {offsets = [0, 8], sizes = [8, 8], strides = [1, 1]} : vector<8x32xbf16> to vector<8x8xbf16>
    %39 = vector.extract_strided_slice %14 {offsets = [0, 8], sizes = [8, 8], strides = [1, 1]} : vector<8x32xbf16> to vector<8x8xbf16>
    %40 = vector.extract_strided_slice %15 {offsets = [0, 8], sizes = [8, 8], strides = [1, 1]} : vector<8x32xbf16> to vector<8x8xbf16>
    %cst_21 = arith.constant dense<0.000000e+00> : vector<8x8xf32>
    %41 = tpu.matmul %38, %39, %cst_21 {dimension_numbers = #tpu.dot_dimension_numbers<[1], [1], [0], [0], [0, 0, 1, 0], [], []>} : vector<8x8xbf16>, vector<8x8xbf16>, vector<8x8xf32> -> vector<8x8xf32>
    %cst_22 = arith.constant dense<0xFF800000> : vector<8xf32>
    %42 = vector.multi_reduction <maximumf>, %41, %cst_22 [1] : vector<8x8xf32> to vector<8xf32>
    %43 = vector.shape_cast %42 : vector<8xf32> to vector<8x1xf32>
    %44 = vector.broadcast %43 : vector<8x1xf32> to vector<8x8xf32>
    %45 = arith.subf %41, %44 : vector<8x8xf32>
    %46 = math.exp %45 : vector<8x8xf32>
    %cst_23 = arith.constant dense<0.000000e+00> : vector<8xf32>
    %47 = vector.multi_reduction <add>, %46, %cst_23 [1] : vector<8x8xf32> to vector<8xf32>
    %48 = vector.shape_cast %47 : vector<8xf32> to vector<8x1xf32>
    %49 = tpu.reciprocal %48 {approx = true} : vector<8x1xf32> -> vector<8x1xf32>
    %50 = vector.broadcast %49 : vector<8x1xf32> to vector<8x8xf32>
    %51 = arith.mulf %46, %50 : vector<8x8xf32>
    %52 = arith.truncf %51 : vector<8x8xf32> to vector<8x8xbf16>
    %c0_24 = arith.constant 0 : index
    %c1 = arith.constant 1 : index
    %c0_25 = arith.constant 0 : index
    %c0_26 = arith.constant 0 : index
    %53 = vector.load %arg12[%c0_24, %c1, %c0_25, %c0_26] : memref<1x4x8x8xbf16, #tpu.memory_space<vmem>>, vector<1x1x8x8xbf16>
    %54 = vector.shape_cast %53 : vector<1x1x8x8xbf16> to vector<8x8xbf16>
    %55 = vector.shape_cast %52 : vector<8x8xbf16> to vector<1x1x8x8xbf16>
    tpu.vector_store %arg12[%c0_24, %c1, %c0_25, %c0_26], %55 {strides = array<i32>} : memref<1x4x8x8xbf16, #tpu.memory_space<vmem>>, vector<1x1x8x8xbf16>,
    %cst_27 = arith.constant dense<0.000000e+00> : vector<8x8xf32>
    %56 = tpu.matmul %52, %40, %cst_27 {dimension_numbers = #tpu.dot_dimension_numbers<[1], [0], [0], [1], [0, 0, 1, 1], [], []>} : vector<8x8xbf16>, vector<8x8xbf16>, vector<8x8xf32> -> vector<8x8xf32>
    %57 = arith.truncf %56 : vector<8x8xf32> to vector<8x8xbf16>
    %c8 = arith.constant 8 : index
    %c0_28 = arith.constant 0 : index
    %58 = vector.load %arg6[%c8, %c0_28] : memref<32x32xbf16, #tpu.memory_space<vmem>>, vector<8x32xbf16>
    %cst_29 = arith.constant dense<0.000000e+00> : vector<8x32xf32>
    %59 = tpu.matmul %57, %58, %cst_29 {dimension_numbers = #tpu.dot_dimension_numbers<[1], [0], [0], [1], [0, 0, 1, 1], [], []>} : vector<8x8xbf16>, vector<8x32xbf16>, vector<8x32xf32> -> vector<8x32xf32>
    %60 = arith.addf %37, %59 : vector<8x32xf32>
    %61 = vector.extract_strided_slice %13 {offsets = [0, 16], sizes = [8, 8], strides = [1, 1]} : vector<8x32xbf16> to vector<8x8xbf16>
    %62 = vector.extract_strided_slice %14 {offsets = [0, 16], sizes = [8, 8], strides = [1, 1]} : vector<8x32xbf16> to vector<8x8xbf16>
    %63 = vector.extract_strided_slice %15 {offsets = [0, 16], sizes = [8, 8], strides = [1, 1]} : vector<8x32xbf16> to vector<8x8xbf16>
    %cst_30 = arith.constant dense<0.000000e+00> : vector<8x8xf32>
    %64 = tpu.matmul %61, %62, %cst_30 {dimension_numbers = #tpu.dot_dimension_numbers<[1], [1], [0], [0], [0, 0, 1, 0], [], []>} : vector<8x8xbf16>, vector<8x8xbf16>, vector<8x8xf32> -> vector<8x8xf32>
    %cst_31 = arith.constant dense<0xFF800000> : vector<8xf32>
    %65 = vector.multi_reduction <maximumf>, %64, %cst_31 [1] : vector<8x8xf32> to vector<8xf32>
    %66 = vector.shape_cast %65 : vector<8xf32> to vector<8x1xf32>
    %67 = vector.broadcast %66 : vector<8x1xf32> to vector<8x8xf32>
    %68 = arith.subf %64, %67 : vector<8x8xf32>
    %69 = math.exp %68 : vector<8x8xf32>
    %cst_32 = arith.constant dense<0.000000e+00> : vector<8xf32>
    %70 = vector.multi_reduction <add>, %69, %cst_32 [1] : vector<8x8xf32> to vector<8xf32>
    %71 = vector.shape_cast %70 : vector<8xf32> to vector<8x1xf32>
    %72 = tpu.reciprocal %71 {approx = true} : vector<8x1xf32> -> vector<8x1xf32>
    %73 = vector.broadcast %72 : vector<8x1xf32> to vector<8x8xf32>
    %74 = arith.mulf %69, %73 : vector<8x8xf32>
    %75 = arith.truncf %74 : vector<8x8xf32> to vector<8x8xbf16>
    %c0_33 = arith.constant 0 : index
    %c2 = arith.constant 2 : index
    %c0_34 = arith.constant 0 : index
    %c0_35 = arith.constant 0 : index
    %76 = vector.load %arg12[%c0_33, %c2, %c0_34, %c0_35] : memref<1x4x8x8xbf16, #tpu.memory_space<vmem>>, vector<1x1x8x8xbf16>
    %77 = vector.shape_cast %76 : vector<1x1x8x8xbf16> to vector<8x8xbf16>
    %78 = vector.shape_cast %75 : vector<8x8xbf16> to vector<1x1x8x8xbf16>
    tpu.vector_store %arg12[%c0_33, %c2, %c0_34, %c0_35], %78 {strides = array<i32>} : memref<1x4x8x8xbf16, #tpu.memory_space<vmem>>, vector<1x1x8x8xbf16>,
    %cst_36 = arith.constant dense<0.000000e+00> : vector<8x8xf32>
    %79 = tpu.matmul %75, %63, %cst_36 {dimension_numbers = #tpu.dot_dimension_numbers<[1], [0], [0], [1], [0, 0, 1, 1], [], []>} : vector<8x8xbf16>, vector<8x8xbf16>, vector<8x8xf32> -> vector<8x8xf32>
    %80 = arith.truncf %79 : vector<8x8xf32> to vector<8x8xbf16>
    %c16 = arith.constant 16 : index
    %c0_37 = arith.constant 0 : index
    %81 = vector.load %arg6[%c16, %c0_37] : memref<32x32xbf16, #tpu.memory_space<vmem>>, vector<8x32xbf16>
    %cst_38 = arith.constant dense<0.000000e+00> : vector<8x32xf32>
    %82 = tpu.matmul %80, %81, %cst_38 {dimension_numbers = #tpu.dot_dimension_numbers<[1], [0], [0], [1], [0, 0, 1, 1], [], []>} : vector<8x8xbf16>, vector<8x32xbf16>, vector<8x32xf32> -> vector<8x32xf32>
    %83 = arith.addf %60, %82 : vector<8x32xf32>
    %84 = vector.extract_strided_slice %13 {offsets = [0, 24], sizes = [8, 8], strides = [1, 1]} : vector<8x32xbf16> to vector<8x8xbf16>
    %85 = vector.extract_strided_slice %14 {offsets = [0, 24], sizes = [8, 8], strides = [1, 1]} : vector<8x32xbf16> to vector<8x8xbf16>
    %86 = vector.extract_strided_slice %15 {offsets = [0, 24], sizes = [8, 8], strides = [1, 1]} : vector<8x32xbf16> to vector<8x8xbf16>
    %cst_39 = arith.constant dense<0.000000e+00> : vector<8x8xf32>
    %87 = tpu.matmul %84, %85, %cst_39 {dimension_numbers = #tpu.dot_dimension_numbers<[1], [1], [0], [0], [0, 0, 1, 0], [], []>} : vector<8x8xbf16>, vector<8x8xbf16>, vector<8x8xf32> -> vector<8x8xf32>
    %cst_40 = arith.constant dense<0xFF800000> : vector<8xf32>
    %88 = vector.multi_reduction <maximumf>, %87, %cst_40 [1] : vector<8x8xf32> to vector<8xf32>
    %89 = vector.shape_cast %88 : vector<8xf32> to vector<8x1xf32>
    %90 = vector.broadcast %89 : vector<8x1xf32> to vector<8x8xf32>
    %91 = arith.subf %87, %90 : vector<8x8xf32>
    %92 = math.exp %91 : vector<8x8xf32>
    %cst_41 = arith.constant dense<0.000000e+00> : vector<8xf32>
    %93 = vector.multi_reduction <add>, %92, %cst_41 [1] : vector<8x8xf32> to vector<8xf32>
    %94 = vector.shape_cast %93 : vector<8xf32> to vector<8x1xf32>
    %95 = tpu.reciprocal %94 {approx = true} : vector<8x1xf32> -> vector<8x1xf32>
    %96 = vector.broadcast %95 : vector<8x1xf32> to vector<8x8xf32>
    %97 = arith.mulf %92, %96 : vector<8x8xf32>
    %98 = arith.truncf %97 : vector<8x8xf32> to vector<8x8xbf16>
    %c0_42 = arith.constant 0 : index
    %c3 = arith.constant 3 : index
    %c0_43 = arith.constant 0 : index
    %c0_44 = arith.constant 0 : index
    %99 = vector.load %arg12[%c0_42, %c3, %c0_43, %c0_44] : memref<1x4x8x8xbf16, #tpu.memory_space<vmem>>, vector<1x1x8x8xbf16>
    %100 = vector.shape_cast %99 : vector<1x1x8x8xbf16> to vector<8x8xbf16>
    %101 = vector.shape_cast %98 : vector<8x8xbf16> to vector<1x1x8x8xbf16>
    tpu.vector_store %arg12[%c0_42, %c3, %c0_43, %c0_44], %101 {strides = array<i32>} : memref<1x4x8x8xbf16, #tpu.memory_space<vmem>>, vector<1x1x8x8xbf16>,
    %cst_45 = arith.constant dense<0.000000e+00> : vector<8x8xf32>
    %102 = tpu.matmul %98, %86, %cst_45 {dimension_numbers = #tpu.dot_dimension_numbers<[1], [0], [0], [1], [0, 0, 1, 1], [], []>} : vector<8x8xbf16>, vector<8x8xbf16>, vector<8x8xf32> -> vector<8x8xf32>
    %103 = arith.truncf %102 : vector<8x8xf32> to vector<8x8xbf16>
    %c24 = arith.constant 24 : index
    %c0_46 = arith.constant 0 : index
    %104 = vector.load %arg6[%c24, %c0_46] : memref<32x32xbf16, #tpu.memory_space<vmem>>, vector<8x32xbf16>
    %cst_47 = arith.constant dense<0.000000e+00> : vector<8x32xf32>
    %105 = tpu.matmul %103, %104, %cst_47 {dimension_numbers = #tpu.dot_dimension_numbers<[1], [0], [0], [1], [0, 0, 1, 1], [], []>} : vector<8x8xbf16>, vector<8x32xbf16>, vector<8x32xf32> -> vector<8x32xf32>
    %106 = arith.addf %83, %105 : vector<8x32xf32>
    %c0_48 = arith.constant 0 : index
    %c0_49 = arith.constant 0 : index
    %107 = vector.load %arg10[%c0_48, %c0_49] : memref<1x32xf32, #tpu.memory_space<vmem>>, vector<1x32xf32>
    %108 = vector.broadcast %107 : vector<1x32xf32> to vector<8x32xf32>
    %109 = arith.addf %106, %108 : vector<8x32xf32>
    %c0_50 = arith.constant 0 : index
    %c0_51 = arith.constant 0 : index
    %c0_52 = arith.constant 0 : index
    %110 = vector.load %arg11[%c0_50, %c0_51, %c0_52] : memref<1x8x32xf32, #tpu.memory_space<vmem>>, vector<1x8x32xf32>
    %111 = vector.shape_cast %110 : vector<1x8x32xf32> to vector<8x32xf32>
    %112 = vector.shape_cast %109 : vector<8x32xf32> to vector<1x8x32xf32>
    tpu.vector_store %arg11[%c0_50, %c0_51, %c0_52], %112 {strides = array<i32>} : memref<1x8x32xf32, #tpu.memory_space<vmem>>, vector<1x8x32xf32>,
    return
  }
  func.func @transform_0(%arg0: i32, %arg1: i32) -> (i32, i32, i32) {
    %c0_i32 = arith.constant 0 : i32
    %c0_i32_0 = arith.constant 0 : i32
    %c0_i32_1 = arith.constant 0 : i32
    return %arg0, %c0_i32, %c0_i32_0 : i32, i32, i32
  }
  func.func @transform_1(%arg0: i32, %arg1: i32) -> (i32, i32) {
    %c0_i32 = arith.constant 0 : i32
    %c0_i32_0 = arith.constant 0 : i32
    %c0_i32_1 = arith.constant 0 : i32
    return %c0_i32, %c0_i32_0 : i32, i32
  }
  func.func @transform_2(%arg0: i32, %arg1: i32) -> (i32, i32) {
    %c0_i32 = arith.constant 0 : i32
    %c0_i32_0 = arith.constant 0 : i32
    %c0_i32_1 = arith.constant 0 : i32
    return %c0_i32, %c0_i32_0 : i32, i32
  }
  func.func @transform_3(%arg0: i32, %arg1: i32) -> (i32, i32) {
    %c0_i32 = arith.constant 0 : i32
    %c0_i32_0 = arith.constant 0 : i32
    %c0_i32_1 = arith.constant 0 : i32
    return %c0_i32, %c0_i32_0 : i32, i32
  }
  func.func @transform_4(%arg0: i32, %arg1: i32) -> (i32, i32) {
    %c0_i32 = arith.constant 0 : i32
    %c0_i32_0 = arith.constant 0 : i32
    %c0_i32_1 = arith.constant 0 : i32
    return %c0_i32, %c0_i32_0 : i32, i32
  }
  func.func @transform_5(%arg0: i32, %arg1: i32) -> (i32, i32) {
    %c0_i32 = arith.constant 0 : i32
    %c0_i32_0 = arith.constant 0 : i32
    %c0_i32_1 = arith.constant 0 : i32
    return %c0_i32, %c0_i32_0 : i32, i32
  }
  func.func @transform_6(%arg0: i32, %arg1: i32) -> (i32, i32) {
    %c0_i32 = arith.constant 0 : i32
    %c0_i32_0 = arith.constant 0 : i32
    %c0_i32_1 = arith.constant 0 : i32
    return %c0_i32, %c0_i32_0 : i32, i32
  }
  func.func @transform_7(%arg0: i32, %arg1: i32) -> (i32, i32) {
    %c0_i32 = arith.constant 0 : i32
    %c0_i32_0 = arith.constant 0 : i32
    %c0_i32_1 = arith.constant 0 : i32
    return %c0_i32, %c0_i32_0 : i32, i32
  }
  func.func @transform_8(%arg0: i32, %arg1: i32) -> (i32, i32) {
    %c0_i32 = arith.constant 0 : i32
    %c0_i32_0 = arith.constant 0 : i32
    %c0_i32_1 = arith.constant 0 : i32
    return %c0_i32, %c0_i32_0 : i32, i32
  }
  func.func @transform_9(%arg0: i32, %arg1: i32) -> (i32, i32, i32) {
    %c0_i32 = arith.constant 0 : i32
    %c0_i32_0 = arith.constant 0 : i32
    return %arg0, %arg1, %c0_i32 : i32, i32, i32
  }
  func.func @transform_10(%arg0: i32, %arg1: i32) -> (i32, i32, i32, i32) {
    %c0_i32 = arith.constant 0 : i32
    %c0_i32_0 = arith.constant 0 : i32
    %c0_i32_1 = arith.constant 0 : i32
    return %arg0, %c0_i32, %arg1, %c0_i32_0 : i32, i32, i32, i32
  }
}

</mosaic_0001>

<llo_original>
// kernel: tpu_custom_call.1
$region0: #{tpu_custom_call.1}
  #allocation0 [shape = 'u32[]', space=smem, size = 0x4, offset = 0x4, fixed_abs, tag = 'smem constant byte address 0x4 - core index']
  #allocation1 [shape = 'u32[144,128]{1,0:T(1,128)}', space=vmem, size = 0x12000, scoped, tag = 'internal scratch']
  #allocation2 [shape = 'bf16[8,32]{1,0:T(8,128)(2,1)}', space=vmem, size = 0x800, scoped, tag = 'scratch operand']
  #allocation3 [shape = 'bf16[8,32]{1,0:T(8,128)(2,1)}', space=vmem, size = 0x800, scoped, tag = 'scratch operand']
  %s0 = inlined_call_operand.hbm [shape: bf16[2,8,32], index: 0, kind: input, shape index: {}]
  %s1 = inlined_call_operand.hbm [shape: bf16[32,32], index: 1, kind: input, shape index: {}]
  %s2 = inlined_call_operand.hbm [shape: bf16[32,32], index: 2, kind: input, shape index: {}]
  %s3 = inlined_call_operand.hbm [shape: bf16[32,32], index: 3, kind: input, shape index: {}]
  %s4 = inlined_call_operand.hbm [shape: bf16[32,32], index: 4, kind: input, shape index: {}]
  %s5 = inlined_call_operand.vmem [shape: f32[1,32], index: 5, kind: input, shape index: {}]
  %s6 = inlined_call_operand.vmem [shape: f32[1,32], index: 6, kind: input, shape index: {}]
  %s7 = inlined_call_operand.vmem [shape: f32[1,32], index: 7, kind: input, shape index: {}]
  %s8 = inlined_call_operand.vmem [shape: f32[1,32], index: 8, kind: input, shape index: {}]
  %s9 = inlined_call_operand.hbm [shape: f32[2,8,32], index: 9, kind: output, shape index: {0}]
  %s10 = inlined_call_operand.hbm [shape: bf16[2,4,8,8], index: 10, kind: output, shape index: {1}]
  %11 = xla_tuple %s9, %s10
  %s12 = sld [smem:[#allocation0]]
  $region101: #{tpu_custom_call.1} parent=0
    _
  %s14 = ssub.s32 1, %s12
  %s15 = scalar_select 0, %s14, %s12
  $region1: #{tpu_custom_call.1} parent=0
    #allocation4 [shape = 'u8[4096]{0}', space=vmem, size = 0x1000, scoped, tag = 'input window, operand 0']
    #allocation5 [shape = 's32[2]{0}', space=sflag, size = 0x8, scoped, tag = 'scoped memory for tpu_custom_call.1']
    #allocation6 [shape = 's32[2]{0}', space=sflag, size = 0x8, scoped, tag = 'scoped memory for tpu_custom_call.1']
    #allocation7 [shape = 'u8[8192]{0}', space=vmem, size = 0x2000, scoped, tag = 'input window, operand 1, single buffered']
    #allocation8 [shape = 's32[1]{0}', space=sflag, size = 0x4, scoped, tag = 'scoped memory for tpu_custom_call.1']
    #allocation9 [shape = 'u8[8192]{0}', space=vmem, size = 0x2000, scoped, tag = 'input window, operand 2, single buffered']
    #allocation10 [shape = 'u8[8192]{0}', space=vmem, size = 0x2000, scoped, tag = 'input window, operand 3, single buffered']
    #allocation11 [shape = 's32[1]{0}', space=sflag, size = 0x4, scoped, tag = 'scoped memory for tpu_custom_call.1']
    #allocation12 [shape = 'u8[8192]{0}', space=vmem, size = 0x2000, scoped, tag = 'input window, operand 4, single buffered']
    #allocation13 [shape = 'u8[8192]{0}', space=vmem, size = 0x2000, scoped, tag = 'output window, operand 0']
    #allocation14 [shape = 'u8[16384]{0}', space=vmem, size = 0x4000, scoped, tag = 'output window, operand 1']
    #allocation15 [shape = 's32[2]{0}', space=sflag, size = 0x8, scoped, tag = 'scoped memory for tpu_custom_call.1']
    %16 = vsyncpa [#allocation5], 0
    %s17 = scalar_lea.sflag [#allocation5], 1
    %18 = vsyncpa %s17, 0
    %19 = vsyncpa [#allocation8], 0
    %20 = vsyncpa [#allocation11], 0
    %21 = vsyncpa [#allocation6], 0
    %s22 = scalar_lea.sflag [#allocation6], 1
    %23 = vsyncpa %s22, 0
    %24 = vsyncpa [#allocation15], 0
    %s25 = scalar_lea.sflag [#allocation15], 1
    %26 = vsyncpa %s25, 0
    loop: start=0, step=1, limit=4
    $region2: #{tpu_custom_call.1} parent=1 // loop_pre_header
      _
    $region3: #{tpu_custom_call.1} parent=1 // loop_header
      %s28 = sphi 0, %s32
      %p29 = scmp.ge.s32.totalorder %s28, 4
      %s35 = sphi 0, %s47
      %s36 = sphi 0, %s43
      %s37 = sphi 0, %s35
      %s38 = sphi 0, %s36
      %s39 = sphi 0, %s37
      %s40 = sphi 0, %s38
      %s50 = sphi 0, %s52
      %s53 = sphi 0, %s50
      %s54 = sphi 0, %s53
      %s70 = sphi 0, %s54
      %s74 = sphi 0, %s74
      %s76 = sphi 0, %s74
      %s77 = sphi 0, %s76
      %s91 = sphi 0, %s77
      %s95 = sphi 0, %s95
      %s97 = sphi 0, %s95
      %s98 = sphi 0, %s97
      %s112 = sphi 0, %s98
      %s116 = sphi 0, %s116
      %s118 = sphi 0, %s116
      %s119 = sphi 0, %s118
      %s133 = sphi 0, %s119
      %s137 = sphi 0, %s137
      %s139 = sphi 0, %s137
      %s140 = sphi 0, %s139
      %s154 = sphi 0, %s140
      %s158 = sphi 0, %s158
      %s160 = sphi 0, %s158
      %s161 = sphi 0, %s160
      %s175 = sphi 0, %s161
      %s179 = sphi 0, %s179
      %s181 = sphi 0, %s179
      %s182 = sphi 0, %s181
      %s196 = sphi 0, %s182
      %s200 = sphi 0, %s200
      %s202 = sphi 0, %s200
      %s203 = sphi 0, %s202
      %s217 = sphi 0, %s203
      %s221 = sphi 0, %s221
      %s223 = sphi 0, %s221
      %s224 = sphi 0, %s223
      %s238 = sphi 0, %s224
      %s246 = sphi 0, %s248
      %s249 = sphi 0, %s246
      %s250 = sphi 0, %s249
      %s266 = sphi 0, %s250
      %s274 = sphi 0, %s276
      %s277 = sphi 0, %s274
      %s278 = sphi 0, %s277
      %s294 = sphi 0, %s278
    $region4: #{tpu_custom_call.1} parent=1 // loop_header_branch
      %31 = sbr.rel (%p29) target = $region8
    $region5: #{tpu_custom_call.1} parent=1 // loop_body
      %s33 = ssub.s32 %s28, 1
      %s34 = ssub.s32 %s28, 2
      %s41 = sadd.s32 1, %s36
      %p42 = scmp.ge.s32.totalorder %s41, 1
      %s43 = scalar_select %p42, 0, %s41
      %s44 = sadd.s32 1, %s35
      %s45 = scalar_select %p42, %s44, %s35
      %p46 = scmp.ge.s32.totalorder %s45, 2
      %s47 = scalar_select %p46, 0, %s45
      %s48 = ssub.s32 %s35, %s47
      %p49 = scmp.eq.s32.totalorder %s48, 0
      %s51 = sadd.s32 %s50, 1
      %s52 = scalar_select %p49, %s50, %s51
      %p55 = pneg %p49
      %p56 = scmp.eq.s32.totalorder %s28, 1
      %p57 = por %p55, %p56
      %p58 = scmp.ne.s32.totalorder %s50, %s53
      %p59 = scmp.eq.s32.totalorder %s28, 0
      %p60 = por %p58, %p59
      %p61 = scmp.ne.s32.totalorder %s50, %s53
      %p62 = scmp.eq.s32.totalorder %s33, 1
      %p63 = por %p61, %p62
      %p64 = scmp.ne.s32.totalorder %s53, %s54
      %p65 = scmp.eq.s32.totalorder %s33, 0
      %p66 = por %p64, %p65
      %p67 = scmp.ne.s32.totalorder %s53, %s54
      %p68 = scmp.eq.s32.totalorder %s34, 1
      %p69 = por %p67, %p68
      %p71 = scmp.ne.s32.totalorder %s54, %s70
      %p72 = scmp.eq.s32.totalorder %s34, 0
      %p73 = por %p71, %p72
      %s75 = sadd.s32 %s74, 1
      %p78 = scmp.eq.s32.totalorder %s28, 1
      %p79 = scmp.ne.s32.totalorder %s74, %s76
      %p80 = scmp.eq.s32.totalorder %s28, 0
      %p81 = por %p79, %p80
      %p82 = scmp.ne.s32.totalorder %s74, %s76
      %p83 = scmp.eq.s32.totalorder %s33, 1
      %p84 = por %p82, %p83
      %p85 = scmp.ne.s32.totalorder %s76, %s77
      %p86 = scmp.eq.s32.totalorder %s33, 0
      %p87 = por %p85, %p86
      %p88 = scmp.ne.s32.totalorder %s76, %s77
      %p89 = scmp.eq.s32.totalorder %s34, 1
      %p90 = por %p88, %p89
      %p92 = scmp.ne.s32.totalorder %s77, %s91
      %p93 = scmp.eq.s32.totalorder %s34, 0
      %p94 = por %p92, %p93
      %s96 = sadd.s32 %s95, 1
      %p99 = scmp.eq.s32.totalorder %s28, 1
      %p100 = scmp.ne.s32.totalorder %s95, %s97
      %p101 = scmp.eq.s32.totalorder %s28, 0
      %p102 = por %p100, %p101
      %p103 = scmp.ne.s32.totalorder %s95, %s97
      %p104 = scmp.eq.s32.totalorder %s33, 1
      %p105 = por %p103, %p104
      %p106 = scmp.ne.s32.totalorder %s97, %s98
      %p107 = scmp.eq.s32.totalorder %s33, 0
      %p108 = por %p106, %p107
      %p109 = scmp.ne.s32.totalorder %s97, %s98
      %p110 = scmp.eq.s32.totalorder %s34, 1
      %p111 = por %p109, %p110
      %p113 = scmp.ne.s32.totalorder %s98, %s112
      %p114 = scmp.eq.s32.totalorder %s34, 0
      %p115 = por %p113, %p114
      %s117 = sadd.s32 %s116, 1
      %p120 = scmp.eq.s32.totalorder %s28, 1
      %p121 = scmp.ne.s32.totalorder %s116, %s118
      %p122 = scmp.eq.s32.totalorder %s28, 0
      %p123 = por %p121, %p122
      %p124 = scmp.ne.s32.totalorder %s116, %s118
      %p125 = scmp.eq.s32.totalorder %s33, 1
      %p126 = por %p124, %p125
      %p127 = scmp.ne.s32.totalorder %s118, %s119
      %p128 = scmp.eq.s32.totalorder %s33, 0
      %p129 = por %p127, %p128
      %p130 = scmp.ne.s32.totalorder %s118, %s119
      %p131 = scmp.eq.s32.totalorder %s34, 1
      %p132 = por %p130, %p131
      %p134 = scmp.ne.s32.totalorder %s119, %s133
      %p135 = scmp.eq.s32.totalorder %s34, 0
      %p136 = por %p134, %p135
      %s138 = sadd.s32 %s137, 1
      %p141 = scmp.eq.s32.totalorder %s28, 1
      %p142 = scmp.ne.s32.totalorder %s137, %s139
      %p143 = scmp.eq.s32.totalorder %s28, 0
      %p144 = por %p142, %p143
      %p145 = scmp.ne.s32.totalorder %s137, %s139
      %p146 = scmp.eq.s32.totalorder %s33, 1
      %p147 = por %p145, %p146
      %p148 = scmp.ne.s32.totalorder %s139, %s140
      %p149 = scmp.eq.s32.totalorder %s33, 0
      %p150 = por %p148, %p149
      %p151 = scmp.ne.s32.totalorder %s139, %s140
      %p152 = scmp.eq.s32.totalorder %s34, 1
      %p153 = por %p151, %p152
      %p155 = scmp.ne.s32.totalorder %s140, %s154
      %p156 = scmp.eq.s32.totalorder %s34, 0
      %p157 = por %p155, %p156
      %s159 = sadd.s32 %s158, 1
      %p162 = scmp.eq.s32.totalorder %s28, 1
      %p163 = scmp.ne.s32.totalorder %s158, %s160
      %p164 = scmp.eq.s32.totalorder %s28, 0
      %p165 = por %p163, %p164
      %p166 = scmp.ne.s32.totalorder %s158, %s160
      %p167 = scmp.eq.s32.totalorder %s33, 1
      %p168 = por %p166, %p167
      %p169 = scmp.ne.s32.totalorder %s160, %s161
      %p170 = scmp.eq.s32.totalorder %s33, 0
      %p171 = por %p169, %p170
      %p172 = scmp.ne.s32.totalorder %s160, %s161
      %p173 = scmp.eq.s32.totalorder %s34, 1
      %p174 = por %p172, %p173
      %p176 = scmp.ne.s32.totalorder %s161, %s175
      %p177 = scmp.eq.s32.totalorder %s34, 0
      %p178 = por %p176, %p177
      %s180 = sadd.s32 %s179, 1
      %p183 = scmp.eq.s32.totalorder %s28, 1
      %p184 = scmp.ne.s32.totalorder %s179, %s181
      %p185 = scmp.eq.s32.totalorder %s28, 0
      %p186 = por %p184, %p185
      %p187 = scmp.ne.s32.totalorder %s179, %s181
      %p188 = scmp.eq.s32.totalorder %s33, 1
      %p189 = por %p187, %p188
      %p190 = scmp.ne.s32.totalorder %s181, %s182
      %p191 = scmp.eq.s32.totalorder %s33, 0
      %p192 = por %p190, %p191
      %p193 = scmp.ne.s32.totalorder %s181, %s182
      %p194 = scmp.eq.s32.totalorder %s34, 1
      %p195 = por %p193, %p194
      %p197 = scmp.ne.s32.totalorder %s182, %s196
      %p198 = scmp.eq.s32.totalorder %s34, 0
      %p199 = por %p197, %p198
      %s201 = sadd.s32 %s200, 1
      %p204 = scmp.eq.s32.totalorder %s28, 1
      %p205 = scmp.ne.s32.totalorder %s200, %s202
      %p206 = scmp.eq.s32.totalorder %s28, 0
      %p207 = por %p205, %p206
      %p208 = scmp.ne.s32.totalorder %s200, %s202
      %p209 = scmp.eq.s32.totalorder %s33, 1
      %p210 = por %p208, %p209
      %p211 = scmp.ne.s32.totalorder %s202, %s203
      %p212 = scmp.eq.s32.totalorder %s33, 0
      %p213 = por %p211, %p212
      %p214 = scmp.ne.s32.totalorder %s202, %s203
      %p215 = scmp.eq.s32.totalorder %s34, 1
      %p216 = por %p214, %p215
      %p218 = scmp.ne.s32.totalorder %s203, %s217
      %p219 = scmp.eq.s32.totalorder %s34, 0
      %p220 = por %p218, %p219
      %s222 = sadd.s32 %s221, 1
      %p225 = scmp.eq.s32.totalorder %s28, 1
      %p226 = scmp.ne.s32.totalorder %s221, %s223
      %p227 = scmp.eq.s32.totalorder %s28, 0
      %p228 = por %p226, %p227
      %p229 = scmp.ne.s32.totalorder %s221, %s223
      %p230 = scmp.eq.s32.totalorder %s33, 1
      %p231 = por %p229, %p230
      %p232 = scmp.ne.s32.totalorder %s223, %s224
      %p233 = scmp.eq.s32.totalorder %s33, 0
      %p234 = por %p232, %p233
      %p235 = scmp.ne.s32.totalorder %s223, %s224
      %p236 = scmp.eq.s32.totalorder %s34, 1
      %p237 = por %p235, %p236
      %p239 = scmp.ne.s32.totalorder %s224, %s238
      %p240 = scmp.eq.s32.totalorder %s34, 0
      %p241 = por %p239, %p240
      %s242 = ssub.s32 %s35, %s47
      %s243 = ssub.s32 %s36, %s43
      %s244 = sor.u32 %s242, %s243
      %p245 = scmp.eq.s32.totalorder %s244, 0
      %s247 = sadd.s32 %s246, 1
      %s248 = scalar_select %p245, %s246, %s247
      %p251 = pneg %p245
      %p252 = scmp.eq.s32.totalorder %s28, 1
      %p253 = por %p251, %p252
      %p254 = scmp.ne.s32.totalorder %s246, %s249
      %p255 = scmp.eq.s32.totalorder %s28, 0
      %p256 = por %p254, %p255
      %p257 = scmp.ne.s32.totalorder %s246, %s249
      %p258 = scmp.eq.s32.totalorder %s33, 1
      %p259 = por %p257, %p258
      %p260 = scmp.ne.s32.totalorder %s249, %s250
      %p261 = scmp.eq.s32.totalorder %s33, 0
      %p262 = por %p260, %p261
      %p263 = scmp.ne.s32.totalorder %s249, %s250
      %p264 = scmp.eq.s32.totalorder %s34, 1
      %p265 = por %p263, %p264
      %p267 = scmp.ne.s32.totalorder %s250, %s266
      %p268 = scmp.eq.s32.totalorder %s34, 0
      %p269 = por %p267, %p268
      %s270 = ssub.s32 %s35, %s47
      %s271 = ssub.s32 %s36, %s43
      %s272 = sor.u32 %s270, %s271
      %p273 = scmp.eq.s32.totalorder %s272, 0
      %s275 = sadd.s32 %s274, 1
      %s276 = scalar_select %p273, %s274, %s275
      %p279 = pneg %p273
      %p280 = scmp.eq.s32.totalorder %s28, 1
      %p281 = por %p279, %p280
      %p282 = scmp.ne.s32.totalorder %s274, %s277
      %p283 = scmp.eq.s32.totalorder %s28, 0
      %p284 = por %p282, %p283
      %p285 = scmp.ne.s32.totalorder %s274, %s277
      %p286 = scmp.eq.s32.totalorder %s33, 1
      %p287 = por %p285, %p286
      %p288 = scmp.ne.s32.totalorder %s277, %s278
      %p289 = scmp.eq.s32.totalorder %s33, 0
      %p290 = por %p288, %p289
      %p291 = scmp.ne.s32.totalorder %s277, %s278
      %p292 = scmp.eq.s32.totalorder %s34, 1
      %p293 = por %p291, %p292
      %p295 = scmp.ne.s32.totalorder %s278, %s294
      %p296 = scmp.eq.s32.totalorder %s34, 0
      %p297 = por %p295, %p296
      %p298 = scmp.le.s32.totalorder 1, %s28
      %p299 = scmp.lt.s32.totalorder %s28, 3
      %p300 = pnand %p298, %p299
      %p301 = pneg %p300
      // Predicated region
      $region9: #{tpu_custom_call.1} parent=5 // pred_check
        _
      $region10: #{tpu_custom_call.1} parent=5 // pred_check_branch
        %303 = sbr.rel (%p300) target = $region12
      $region11: #{tpu_custom_call.1} parent=5 // pred_region
        %s304 = ssub.s32 %s28, 1
        // Predicated region
        $region13: #{tpu_custom_call.1} parent=11 // pred_check
          %p305 = pneg %p87
        $region14: #{tpu_custom_call.1} parent=11 // pred_check_branch
          %307 = sbr.rel (%p305) target = $region16
        $region15: #{tpu_custom_call.1} parent=11 // pred_region
          %s309 = ssub.s32 256, 256
          %310 = vsyncadd [#allocation8], %s309
          %s311 = sshll.u32 [#allocation7], 4
          %s312 = int_to_ptr.vmem [resolvable:$true] %s311
          %317 = dma.hbm_to_vmem [thread:$0]  %s1, 256, %s312, [#allocation8], 64, 64, 4
        $region16: #{tpu_custom_call.1} parent=11 // pred_fallthru
          _
        // Predicated region
        $region17: #{tpu_custom_call.1} parent=11 // pred_check
          %p318 = pneg %p108
        $region18: #{tpu_custom_call.1} parent=11 // pred_check_branch
          %320 = sbr.rel (%p318) target = $region20
        $region19: #{tpu_custom_call.1} parent=11 // pred_region
          %s322 = ssub.s32 256, 256
          %323 = vsyncadd [#allocation8], %s322
          %s324 = sshll.u32 [#allocation9], 4
          %s325 = int_to_ptr.vmem [resolvable:$true] %s324
          %330 = dma.hbm_to_vmem [thread:$0]  %s2, 256, %s325, [#allocation8], 64, 64, 4
        $region20: #{tpu_custom_call.1} parent=11 // pred_fallthru
          _
        // Predicated region
        $region21: #{tpu_custom_call.1} parent=11 // pred_check
          %p331 = pneg %p129
        $region22: #{tpu_custom_call.1} parent=11 // pred_check_branch
          %333 = sbr.rel (%p331) target = $region24
        $region23: #{tpu_custom_call.1} parent=11 // pred_region
          %s335 = ssub.s32 256, 256
          %336 = vsyncadd [#allocation11], %s335
          %s337 = sshll.u32 [#allocation10], 4
          %s338 = int_to_ptr.vmem [resolvable:$true] %s337
          %343 = dma.hbm_to_vmem [thread:$0]  %s3, 256, %s338, [#allocation11], 64, 64, 4
        $region24: #{tpu_custom_call.1} parent=11 // pred_fallthru
          _
        // Predicated region
        $region25: #{tpu_custom_call.1} parent=11 // pred_check
          %p344 = pneg %p150
        $region26: #{tpu_custom_call.1} parent=11 // pred_check_branch
          %346 = sbr.rel (%p344) target = $region28
        $region27: #{tpu_custom_call.1} parent=11 // pred_region
          %s348 = ssub.s32 256, 256
          %349 = vsyncadd [#allocation11], %s348
          %s350 = sshll.u32 [#allocation12], 4
          %s351 = int_to_ptr.vmem [resolvable:$true] %s350
          %356 = dma.hbm_to_vmem [thread:$0]  %s4, 256, %s351, [#allocation11], 64, 64, 4
        $region28: #{tpu_custom_call.1} parent=11 // pred_fallthru
          _
        // Predicated region
        $region29: #{tpu_custom_call.1} parent=11 // pred_check
          %p357 = pneg %p171
        $region30: #{tpu_custom_call.1} parent=11 // pred_check_branch
          %359 = sbr.rel (%p357) target = $region32
        $region31: #{tpu_custom_call.1} parent=11 // pred_region
          _
        $region32: #{tpu_custom_call.1} parent=11 // pred_fallthru
          _
        // Predicated region
        $region33: #{tpu_custom_call.1} parent=11 // pred_check
          %p360 = pneg %p192
        $region34: #{tpu_custom_call.1} parent=11 // pred_check_branch
          %362 = sbr.rel (%p360) target = $region36
        $region35: #{tpu_custom_call.1} parent=11 // pred_region
          _
        $region36: #{tpu_custom_call.1} parent=11 // pred_fallthru
          _
        // Predicated region
        $region37: #{tpu_custom_call.1} parent=11 // pred_check
          %p363 = pneg %p213
        $region38: #{tpu_custom_call.1} parent=11 // pred_check_branch
          %365 = sbr.rel (%p363) target = $region40
        $region39: #{tpu_custom_call.1} parent=11 // pred_region
          _
        $region40: #{tpu_custom_call.1} parent=11 // pred_fallthru
          _
        // Predicated region
        $region41: #{tpu_custom_call.1} parent=11 // pred_check
          %p366 = pneg %p234
        $region42: #{tpu_custom_call.1} parent=11 // pred_check_branch
          %368 = sbr.rel (%p366) target = $region44
        $region43: #{tpu_custom_call.1} parent=11 // pred_region
          _
        $region44: #{tpu_custom_call.1} parent=11 // pred_fallthru
          _
      $region12: #{tpu_custom_call.1} parent=5 // pred_fallthru
        _
      %p369 = scmp.lt.s32.totalorder %s28, 2
      // Predicated region
      $region45: #{tpu_custom_call.1} parent=5 // pred_check
        %p370 = pneg %p369
      $region46: #{tpu_custom_call.1} parent=5 // pred_check_branch
        %372 = sbr.rel (%p370) target = $region48
      $region47: #{tpu_custom_call.1} parent=5 // pred_region
        // Predicated region
        $region49: #{tpu_custom_call.1} parent=47 // pred_check
          %p373 = pneg %p60
        $region50: #{tpu_custom_call.1} parent=47 // pred_check_branch
          %375 = sbr.rel (%p373) target = $region52
        $region51: #{tpu_custom_call.1} parent=47 // pred_region
          %s376 = sand.u32 %s50, 1
          %s377 = scalar_lea.sflag [#allocation5], %s376
          %s378 = sand.u32 %s50, 1
          %s379 = smul.addr %s378, 4
          %s380 = scalar_lea.vmem [#allocation4], %s379
          %s382 = ssub.s32 64, 64
          %383 = vsyncadd %s377, %s382
          %s384 = smul.addr %s35, 64
          %s385 = scalar_lea.hbm %s0, %s384
          %s387 = sshll.u32 %s380, 4
          %s388 = int_to_ptr.vmem [resolvable:$true] %s387
          %390 = dma.hbm_to_vmem [thread:$0]  %s385, 64, %s388, %s377
        $region52: #{tpu_custom_call.1} parent=47 // pred_fallthru
          _
      $region48: #{tpu_custom_call.1} parent=5 // pred_fallthru
        _
      %p391 = scmp.le.s32.totalorder 1, %s28
      %p392 = scmp.lt.s32.totalorder %s28, 3
      %p393 = pnand %p391, %p392
      %p394 = pneg %p393
      // Predicated region
      $region53: #{tpu_custom_call.1} parent=5 // pred_check
        _
      $region54: #{tpu_custom_call.1} parent=5 // pred_check_branch
        %396 = sbr.rel (%p393) target = $region56
      $region55: #{tpu_custom_call.1} parent=5 // pred_region
        %s397 = ssub.s32 %s28, 1
        %s398 = sand.u32 %s53, 1
        %s399 = scalar_lea.sflag [#allocation5], %s398
        %s400 = sand.u32 %s53, 1
        %s401 = smul.addr %s400, 4
        %s402 = scalar_lea.vmem [#allocation4], %s401
        // Predicated region
        $region57: #{tpu_custom_call.1} parent=55 // pred_check
          %p403 = pneg %p66
        $region58: #{tpu_custom_call.1} parent=55 // pred_check_branch
          %405 = sbr.rel (%p403) target = $region60
        $region59: #{tpu_custom_call.1} parent=55 // pred_region
          %406 = dma.done %s399, 64
        $region60: #{tpu_custom_call.1} parent=55 // pred_fallthru
          _
        // Predicated region
        $region61: #{tpu_custom_call.1} parent=55 // pred_check
          %p407 = pneg %p87
        $region62: #{tpu_custom_call.1} parent=55 // pred_check_branch
          %409 = sbr.rel (%p407) target = $region64
        $region63: #{tpu_custom_call.1} parent=55 // pred_region
          %410 = dma.done [#allocation8], 256
        $region64: #{tpu_custom_call.1} parent=55 // pred_fallthru
          _
        // Predicated region
        $region65: #{tpu_custom_call.1} parent=55 // pred_check
          %p411 = pneg %p108
        $region66: #{tpu_custom_call.1} parent=55 // pred_check_branch
          %413 = sbr.rel (%p411) target = $region68
        $region67: #{tpu_custom_call.1} parent=55 // pred_region
          %414 = dma.done [#allocation8], 256
        $region68: #{tpu_custom_call.1} parent=55 // pred_fallthru
          _
        // Predicated region
        $region69: #{tpu_custom_call.1} parent=55 // pred_check
          %p415 = pneg %p129
        $region70: #{tpu_custom_call.1} parent=55 // pred_check_branch
          %417 = sbr.rel (%p415) target = $region72
        $region71: #{tpu_custom_call.1} parent=55 // pred_region
          %418 = dma.done [#allocation11], 256
        $region72: #{tpu_custom_call.1} parent=55 // pred_fallthru
          _
        // Predicated region
        $region73: #{tpu_custom_call.1} parent=55 // pred_check
          %p419 = pneg %p150
        $region74: #{tpu_custom_call.1} parent=55 // pred_check_branch
          %421 = sbr.rel (%p419) target = $region76
        $region75: #{tpu_custom_call.1} parent=55 // pred_region
          %422 = dma.done [#allocation11], 256
        $region76: #{tpu_custom_call.1} parent=55 // pred_fallthru
          _
        %s423 = sand.u32 %s53, 1
        %s424 = scalar_lea.sflag [#allocation5], %s423
        %s425 = sand.u32 %s53, 1
        %s426 = smul.addr %s425, 4
        %s427 = scalar_lea.vmem [#allocation4], %s426
        %p428 = pneg %p66
        %p429 = pneg %p63
        %p430 = pneg %p87
        %p431 = pneg %p84
        %p432 = pneg %p108
        %p433 = pneg %p105
        %p434 = pneg %p129
        %p435 = pneg %p126
        %p436 = pneg %p150
        %p437 = pneg %p147
        %p438 = pneg %p171
        %p439 = pneg %p168
        %p440 = pneg %p192
        %p441 = pneg %p189
        %p442 = pneg %p213
        %p443 = pneg %p210
        %p444 = pneg %p234
        %p445 = pneg %p231
        %p446 = pneg %p262
        %p447 = pneg %p259
        %s448 = sand.u32 %s249, 1
        %s449 = scalar_lea.sflag [#allocation6], %s448
        %s450 = sand.u32 %s249, 1
        %s451 = smul.addr %s450, 8
        %s452 = scalar_lea.vmem [#allocation13], %s451
        %p453 = pneg %p290
        %p454 = pneg %p287
        %s455 = sand.u32 %s277, 1
        %s456 = scalar_lea.sflag [#allocation15], %s455
        %s457 = sand.u32 %s277, 1
        %s458 = smul.addr %s457, 16
        %s459 = scalar_lea.vmem [#allocation14], %s458
        %p461 = scmp.eq.s32.totalorder %s38, 0
        // Predicated region
        $region77: #{tpu_custom_call.1} parent=55 // pred_check
          %p462 = pneg %p461
        $region78: #{tpu_custom_call.1} parent=55 // pred_check_branch
          %464 = sbr.rel (%p462) target = $region80
        $region79: #{tpu_custom_call.1} parent=55 // pred_region
          %v465 = vld [vmem:[%s402] sm:$0xf]
          %v466 = vld [vmem:[#allocation9] sm:$0xf]
          %v467 = vld [vmem:[#allocation9 + $0x4] sm:$0xf]
          %v468 = vld [vmem:[#allocation9 + $0x8] sm:$0xf]
          %v469 = vld [vmem:[#allocation9 + $0xc] sm:$0xf]
          %v470 = vld [vmem:[%s6] sm:$0x1]
          %v472 = vlaneseq
          %v473 = vshrl.u32 %v472, 7
          %v474 = vsub.s32 0, %v473
          %v475 = vrot.slane %v470, %v474
          %v481 = vunpack.c.l.b16 %v466
          %v482 = vunpack.c.l.b16 %v467
          %v483 = vunpack.c.l.b16 %v468
          %v484 = vunpack.c.l.b16 %v469
          %v485 = vpack.c.b16 %v482, %v481
          %v486 = vpack.c.b16 %v484, %v483
          %vm489 = vcmask 261120
          %v491 = vsel %vm489, %v465, 0
          %493 = vmatprep.subr.bf16.mxu0 0
          %494 = vmatpush1.bf16.msra.mxu0 %v485
          %495 = vmatprep.subr.bf16.mxu0 0
          %496 = vmatpush1.bf16.msra.mxu0 %v486
          %497 = vmatprep.subr.bf16.mxu0 0
          %498 = vmatpush1.bf16.msra.mxu0 0
          %499 = vmatprep.subr.bf16.mxu0 0
          %500 = vmatpush1.bf16.msra.mxu0 0
          %501 = vmatprep.subr.bf16.mxu0 0
          %502 = vmatpush1.bf16.msra.mxu0 0
          %503 = vmatprep.subr.bf16.mxu0 0
          %504 = vmatpush1.bf16.msra.mxu0 0
          %505 = vmatprep.subr.bf16.mxu0 0
          %506 = vmatpush1.bf16.msra.mxu0 0
          %507 = vmatprep.subr.bf16.mxu0 0
          %508 = vmatpush1.bf16.msra.mxu0 0
          %509 = vmatprep.subr.bf16.mxu0 0
          %510 = vmatpush1.bf16.msra.mxu0 0
          %511 = vmatprep.subr.bf16.mxu0 0
          %512 = vmatpush1.bf16.msra.mxu0 0
          %513 = vmatprep.subr.bf16.mxu0 0
          %514 = vmatpush1.bf16.msra.mxu0 0
          %515 = vmatprep.subr.bf16.mxu0 0
          %516 = vmatpush1.bf16.msra.mxu0 0
          %517 = vmatprep.subr.bf16.mxu0 0
          %518 = vmatpush1.bf16.msra.mxu0 0
          %519 = vmatprep.subr.bf16.mxu0 0
          %520 = vmatpush1.bf16.msra.mxu0 0
          %521 = vmatprep.subr.bf16.mxu0 0
          %522 = vmatpush1.bf16.msra.mxu0 0
          %523 = vmatprep.subr.bf16.mxu0 0
          %524 = vmatpush1.bf16.msra.mxu0 0
          %525 = vmatprep.mubr.bf16.mxu0 0
          %526 = vmatmul.mubr.bf16.gmra.mrb[0].mxu0 %v491
          %v527 = vpop.f32.mrb[0].mxu0
          %v528 = vadd.f32 %v475, %v527
          %v529 = vpop.f32.mrb[0].mxu0
          %v530 = vpop.f32.mrb[0].mxu0
          %v531 = vpop.f32.mrb[0].mxu0
          %532 = vdwg.mxu0
          %v533 = vpack.c.bf16 %v528, %v528
          %vm534 = vcmask 257024
          %535 = vst.msk [vmem:[#allocation2] sm:$0xf] %vm534, %v533
          %v536 = vld [vmem:[#allocation10] sm:$0xf]
          %v537 = vld [vmem:[#allocation10 + $0x4] sm:$0xf]
          %v538 = vld [vmem:[#allocation10 + $0x8] sm:$0xf]
          %v539 = vld [vmem:[#allocation10 + $0xc] sm:$0xf]
          %v540 = vld [vmem:[%s7] sm:$0x1]
          %v542 = vlaneseq
          %v543 = vshrl.u32 %v542, 7
          %v544 = vsub.s32 0, %v543
          %v545 = vrot.slane %v540, %v544
          %v551 = vunpack.c.l.b16 %v536
          %v552 = vunpack.c.l.b16 %v537
          %v553 = vunpack.c.l.b16 %v538
          %v554 = vunpack.c.l.b16 %v539
          %v555 = vpack.c.b16 %v552, %v551
          %v556 = vpack.c.b16 %v554, %v553
          %559 = vmatprep.subr.bf16.mxu0 0
          %560 = vmatpush1.bf16.msra.mxu0 %v555
          %561 = vmatprep.subr.bf16.mxu0 0
          %562 = vmatpush1.bf16.msra.mxu0 %v556
          %563 = vmatprep.subr.bf16.mxu0 0
          %564 = vmatpush1.bf16.msra.mxu0 0
          %565 = vmatprep.subr.bf16.mxu0 0
          %566 = vmatpush1.bf16.msra.mxu0 0
          %567 = vmatprep.subr.bf16.mxu0 0
          %568 = vmatpush1.bf16.msra.mxu0 0
          %569 = vmatprep.subr.bf16.mxu0 0
          %570 = vmatpush1.bf16.msra.mxu0 0
          %571 = vmatprep.subr.bf16.mxu0 0
          %572 = vmatpush1.bf16.msra.mxu0 0
          %573 = vmatprep.subr.bf16.mxu0 0
          %574 = vmatpush1.bf16.msra.mxu0 0
          %575 = vmatprep.subr.bf16.mxu0 0
          %576 = vmatpush1.bf16.msra.mxu0 0
          %577 = vmatprep.subr.bf16.mxu0 0
          %578 = vmatpush1.bf16.msra.mxu0 0
          %579 = vmatprep.subr.bf16.mxu0 0
          %580 = vmatpush1.bf16.msra.mxu0 0
          %581 = vmatprep.subr.bf16.mxu0 0
          %582 = vmatpush1.bf16.msra.mxu0 0
          %583 = vmatprep.subr.bf16.mxu0 0
          %584 = vmatpush1.bf16.msra.mxu0 0
          %585 = vmatprep.subr.bf16.mxu0 0
          %586 = vmatpush1.bf16.msra.mxu0 0
          %587 = vmatprep.subr.bf16.mxu0 0
          %588 = vmatpush1.bf16.msra.mxu0 0
          %589 = vmatprep.subr.bf16.mxu0 0
          %590 = vmatpush1.bf16.msra.mxu0 0
          %591 = vmatprep.mubr.bf16.mxu0 0
          %592 = vmatmul.mubr.bf16.gmra.mrb[0].mxu0 %v491
          %v593 = vpop.f32.mrb[0].mxu0
          %v594 = vadd.f32 %v545, %v593
          %v595 = vpop.f32.mrb[0].mxu0
          %v596 = vpop.f32.mrb[0].mxu0
          %v597 = vpop.f32.mrb[0].mxu0
          %598 = vdwg.mxu0
          %v599 = vpack.c.bf16 %v594, %v594
          %600 = vst.msk [vmem:[#allocation3] sm:$0xf] %vm534, %v599
        $region80: #{tpu_custom_call.1} parent=55 // pred_fallthru
          _
        %s601 = smul.u32 %s38, 8
        %s602 = sshra.s32 %s601, 3
        %s603 = sand.u32 %s601, 7
        %s604 = smul.addr %s602, 4
        %s605 = scalar_lea.vmem %s402, %s604 [#allocation4]
        %v606 = vld [vmem:[%s605] sm:$0xf]
        %v607 = vld [vmem:[#allocation7] sm:$0xf]
        %v608 = vld [vmem:[#allocation7 + $0x4] sm:$0xf]
        %v609 = vld [vmem:[#allocation7 + $0x8] sm:$0xf]
        %v610 = vld [vmem:[#allocation7 + $0xc] sm:$0xf]
        %v611 = vld [vmem:[%s5] sm:$0x1]
        %v613 = vlaneseq
        %v614 = vshrl.u32 %v613, 7
        %v615 = vsub.s32 0, %v614
        %v616 = vrot.slane %v611, %v615
        %v622 = vunpack.c.l.b16 %v607
        %v623 = vunpack.c.l.b16 %v608
        %v624 = vunpack.c.l.b16 %v609
        %v625 = vunpack.c.l.b16 %v610
        %v626 = vpack.c.b16 %v623, %v622
        %v627 = vpack.c.b16 %v625, %v624
        %vm630 = vcmask 261120
        %v632 = vsel %vm630, %v606, 0
        %634 = vmatprep.subr.bf16.mxu0 0
        %635 = vmatpush1.bf16.msra.mxu0 %v626
        %636 = vmatprep.subr.bf16.mxu0 0
        %637 = vmatpush1.bf16.msra.mxu0 %v627
        %638 = vmatprep.subr.bf16.mxu0 0
        %639 = vmatpush1.bf16.msra.mxu0 0
        %640 = vmatprep.subr.bf16.mxu0 0
        %641 = vmatpush1.bf16.msra.mxu0 0
        %642 = vmatprep.subr.bf16.mxu0 0
        %643 = vmatpush1.bf16.msra.mxu0 0
        %644 = vmatprep.subr.bf16.mxu0 0
        %645 = vmatpush1.bf16.msra.mxu0 0
        %646 = vmatprep.subr.bf16.mxu0 0
        %647 = vmatpush1.bf16.msra.mxu0 0
        %648 = vmatprep.subr.bf16.mxu0 0
        %649 = vmatpush1.bf16.msra.mxu0 0
        %650 = vmatprep.subr.bf16.mxu0 0
        %651 = vmatpush1.bf16.msra.mxu0 0
        %652 = vmatprep.subr.bf16.mxu0 0
        %653 = vmatpush1.bf16.msra.mxu0 0
        %654 = vmatprep.subr.bf16.mxu0 0
        %655 = vmatpush1.bf16.msra.mxu0 0
        %656 = vmatprep.subr.bf16.mxu0 0
        %657 = vmatpush1.bf16.msra.mxu0 0
        %658 = vmatprep.subr.bf16.mxu0 0
        %659 = vmatpush1.bf16.msra.mxu0 0
        %660 = vmatprep.subr.bf16.mxu0 0
        %661 = vmatpush1.bf16.msra.mxu0 0
        %662 = vmatprep.subr.bf16.mxu0 0
        %663 = vmatpush1.bf16.msra.mxu0 0
        %664 = vmatprep.subr.bf16.mxu0 0
        %665 = vmatpush1.bf16.msra.mxu0 0
        %666 = vmatprep.mubr.bf16.mxu0 0
        %667 = vmatmul.mubr.bf16.gmra.mrb[0].mxu0 %v632
        %v668 = vpop.f32.mrb[0].mxu0
        %v669 = vadd.f32 %v616, %v668
        %v670 = vpop.f32.mrb[0].mxu0
        %v671 = vpop.f32.mrb[0].mxu0
        %v672 = vpop.f32.mrb[0].mxu0
        %673 = vdwg.mxu0
        %v674 = vpack.c.bf16 %v669, %v669
        %v675 = vld [vmem:[#allocation2] sm:$0xf]
        %v676 = vld [vmem:[#allocation3] sm:$0xf]
        %vm677 = vcmask 64512
        %v679 = vsel %vm677, %v674, 0
        %v682 = vsel %vm677, %v675, 0
        %684 = vmatprep.subr.bf16.mxu0 0
        %685 = vmatpush1.bf16.xpose.msra.mxu0 %v682
        %686 = vmatprep.subr.bf16.mxu0 0
        %687 = vmatpush1.bf16.xpose.msra.mxu0 0
        %688 = vmatprep.subr.bf16.mxu0 0
        %689 = vmatpush1.bf16.xpose.msra.mxu0 0
        %690 = vmatprep.subr.bf16.mxu0 0
        %691 = vmatpush1.bf16.xpose.msra.mxu0 0
        %692 = vmatprep.subr.bf16.mxu0 0
        %693 = vmatpush1.bf16.xpose.msra.mxu0 0
        %694 = vmatprep.subr.bf16.mxu0 0
        %695 = vmatpush1.bf16.xpose.msra.mxu0 0
        %696 = vmatprep.subr.bf16.mxu0 0
        %697 = vmatpush1.bf16.xpose.msra.mxu0 0
        %698 = vmatprep.subr.bf16.mxu0 0
        %699 = vmatpush1.bf16.xpose.msra.mxu0 0
        %700 = vmatprep.subr.bf16.mxu0 0
        %701 = vmatpush1.bf16.xpose.msra.mxu0 0
        %702 = vmatprep.subr.bf16.mxu0 0
        %703 = vmatpush1.bf16.xpose.msra.mxu0 0
        %704 = vmatprep.subr.bf16.mxu0 0
        %705 = vmatpush1.bf16.xpose.msra.mxu0 0
        %706 = vmatprep.subr.bf16.mxu0 0
        %707 = vmatpush1.bf16.xpose.msra.mxu0 0
        %708 = vmatprep.subr.bf16.mxu0 0
        %709 = vmatpush1.bf16.xpose.msra.mxu0 0
        %710 = vmatprep.subr.bf16.mxu0 0
        %711 = vmatpush1.bf16.xpose.msra.mxu0 0
        %712 = vmatprep.subr.bf16.mxu0 0
        %713 = vmatpush1.bf16.xpose.msra.mxu0 0
        %714 = vmatprep.subr.bf16.mxu0 0
        %715 = vmatpush1.bf16.xpose.msra.mxu0 0
        %716 = vmatprep.mubr.bf16.mxu0 0
        %717 = vmatmul.mubr.bf16.gmra.mrb[0].mxu0 %v679
        %v718 = vpop.f32.mrb[0].mxu0
        %v719 = vadd.f32 0.0, %v718
        %v720 = vpop.f32.mrb[0].mxu0
        %v721 = vpop.f32.mrb[0].mxu0
        %v722 = vpop.f32.mrb[0].mxu0
        %723 = vdwg.mxu0
        %v724 = vsel %vm677, %v719, -inf
        %725 = vmax.xlane.f32.xlu0 %v724
        %v726 = vpop.xlane.xlu0 %725
        %v727 = vsub.f32 %v719, %v726
        %v728 = vmul.f32 %v727, 1.442695
        %v729 = vpow.pop %v728
        %v730 = vsel %vm677, %v729, 0.0
        %731 = vadd.xlane.f32.xlu0 %v730
        %v732 = vpop.xlane.xlu0 %731
        %v733 = vrcp.pop %v732
        %v734 = vmul.f32 %v729, %v733
        %v735 = vpack.c.bf16 %v734, %v734
        %vm736 = vcmask 60416
        %737 = vst.msk [vmem:[%s459] sm:$0xf] %vm736, %v735
        %v739 = vsel %vm677, %v735, 0
        %vm741 = vcmask 1043456
        %v743 = vsel %vm741, %v676, 0
        %745 = vmatprep.subr.bf16.mxu0 0
        %746 = vmatpush1.bf16.msra.mxu0 %v743
        %747 = vmatprep.subr.bf16.mxu0 0
        %748 = vmatpush1.bf16.msra.mxu0 0
        %749 = vmatprep.subr.bf16.mxu0 0
        %750 = vmatpush1.bf16.msra.mxu0 0
        %751 = vmatprep.subr.bf16.mxu0 0
        %752 = vmatpush1.bf16.msra.mxu0 0
        %753 = vmatprep.subr.bf16.mxu0 0
        %754 = vmatpush1.bf16.msra.mxu0 0
        %755 = vmatprep.subr.bf16.mxu0 0
        %756 = vmatpush1.bf16.msra.mxu0 0
        %757 = vmatprep.subr.bf16.mxu0 0
        %758 = vmatpush1.bf16.msra.mxu0 0
        %759 = vmatprep.subr.bf16.mxu0 0
        %760 = vmatpush1.bf16.msra.mxu0 0
        %761 = vmatprep.subr.bf16.mxu0 0
        %762 = vmatpush1.bf16.msra.mxu0 0
        %763 = vmatprep.subr.bf16.mxu0 0
        %764 = vmatpush1.bf16.msra.mxu0 0
        %765 = vmatprep.subr.bf16.mxu0 0
        %766 = vmatpush1.bf16.msra.mxu0 0
        %767 = vmatprep.subr.bf16.mxu0 0
        %768 = vmatpush1.bf16.msra.mxu0 0
        %769 = vmatprep.subr.bf16.mxu0 0
        %770 = vmatpush1.bf16.msra.mxu0 0
        %771 = vmatprep.subr.bf16.mxu0 0
        %772 = vmatpush1.bf16.msra.mxu0 0
        %773 = vmatprep.subr.bf16.mxu0 0
        %774 = vmatpush1.bf16.msra.mxu0 0
        %775 = vmatprep.subr.bf16.mxu0 0
        %776 = vmatpush1.bf16.msra.mxu0 0
        %777 = vmatprep.mubr.bf16.mxu0 0
        %778 = vmatmul.mubr.bf16.gmra.mrb[0].mxu0 %v739
        %v779 = vpop.f32.mrb[0].mxu0
        %v780 = vadd.f32 0.0, %v779
        %v781 = vpop.f32.mrb[0].mxu0
        %v782 = vpop.f32.mrb[0].mxu0
        %v783 = vpop.f32.mrb[0].mxu0
        %784 = vdwg.mxu0
        %v785 = vpack.c.bf16 %v780, %v780
        %v786 = vld [vmem:[#allocation12] sm:$0xf]
        %788 = vrot.lane.b32.xlu0 %v674, 120
        %v789 = vpop.permute.xlu0 %788
        %v791 = vunpack.c.l.b16 %v675
        %v792 = vpack.c.b16 %v791, %v791
        %793 = vrot.lane.b32.xlu0 %v792, 120
        %v794 = vpop.permute.xlu0 %793
        %v796 = vsel %vm677, %v789, 0
        %v799 = vsel %vm677, %v794, 0
        %801 = vmatprep.subr.bf16.mxu0 0
        %802 = vmatpush1.bf16.xpose.msra.mxu0 %v799
        %803 = vmatprep.subr.bf16.mxu0 0
        %804 = vmatpush1.bf16.xpose.msra.mxu0 0
        %805 = vmatprep.subr.bf16.mxu0 0
        %806 = vmatpush1.bf16.xpose.msra.mxu0 0
        %807 = vmatprep.subr.bf16.mxu0 0
        %808 = vmatpush1.bf16.xpose.msra.mxu0 0
        %809 = vmatprep.subr.bf16.mxu0 0
        %810 = vmatpush1.bf16.xpose.msra.mxu0 0
        %811 = vmatprep.subr.bf16.mxu0 0
        %812 = vmatpush1.bf16.xpose.msra.mxu0 0
        %813 = vmatprep.subr.bf16.mxu0 0
        %814 = vmatpush1.bf16.xpose.msra.mxu0 0
        %815 = vmatprep.subr.bf16.mxu0 0
        %816 = vmatpush1.bf16.xpose.msra.mxu0 0
        %817 = vmatprep.subr.bf16.mxu0 0
        %818 = vmatpush1.bf16.xpose.msra.mxu0 0
        %819 = vmatprep.subr.bf16.mxu0 0
        %820 = vmatpush1.bf16.xpose.msra.mxu0 0
        %821 = vmatprep.subr.bf16.mxu0 0
        %822 = vmatpush1.bf16.xpose.msra.mxu0 0
        %823 = vmatprep.subr.bf16.mxu0 0
        %824 = vmatpush1.bf16.xpose.msra.mxu0 0
        %825 = vmatprep.subr.bf16.mxu0 0
        %826 = vmatpush1.bf16.xpose.msra.mxu0 0
        %827 = vmatprep.subr.bf16.mxu0 0
        %828 = vmatpush1.bf16.xpose.msra.mxu0 0
        %829 = vmatprep.subr.bf16.mxu0 0
        %830 = vmatpush1.bf16.xpose.msra.mxu0 0
        %831 = vmatprep.subr.bf16.mxu0 0
        %832 = vmatpush1.bf16.xpose.msra.mxu0 0
        %833 = vmatprep.mubr.bf16.mxu0 0
        %834 = vmatmul.mubr.bf16.gmra.mrb[0].mxu0 %v796
        %v835 = vpop.f32.mrb[0].mxu0
        %v836 = vadd.f32 0.0, %v835
        %v837 = vpop.f32.mrb[0].mxu0
        %v838 = vpop.f32.mrb[0].mxu0
        %v839 = vpop.f32.mrb[0].mxu0
        %840 = vdwg.mxu0
        %v841 = vsel %vm677, %v836, -inf
        %842 = vmax.xlane.f32.xlu0 %v841
        %v843 = vpop.xlane.xlu0 %842
        %v844 = vsub.f32 %v836, %v843
        %v845 = vmul.f32 %v844, 1.442695
        %v846 = vpow.pop %v845
        %v847 = vsel %vm677, %v846, 0.0
        %848 = vadd.xlane.f32.xlu0 %v847
        %v849 = vpop.xlane.xlu0 %848
        %v850 = vrcp.pop %v849
        %v851 = vmul.f32 %v846, %v850
        %v852 = vpack.c.bf16 %v851, %v851
        %s853 = scalar_lea.vmem %s459, 4 [#allocation14]
        %854 = vst.msk [vmem:[%s853] sm:$0xf] %vm736, %v852
        %v856 = vunpack.c.l.b16 %v676
        %v857 = vpack.c.b16 %v856, %v856
        %858 = vrot.lane.b32.xlu0 %v857, 120
        %v859 = vpop.permute.xlu0 %858
        %v861 = vsel %vm677, %v852, 0
        %v864 = vsel %vm741, %v859, 0
        %866 = vmatprep.subr.bf16.mxu0 0
        %867 = vmatpush1.bf16.msra.mxu0 %v864
        %868 = vmatprep.subr.bf16.mxu0 0
        %869 = vmatpush1.bf16.msra.mxu0 0
        %870 = vmatprep.subr.bf16.mxu0 0
        %871 = vmatpush1.bf16.msra.mxu0 0
        %872 = vmatprep.subr.bf16.mxu0 0
        %873 = vmatpush1.bf16.msra.mxu0 0
        %874 = vmatprep.subr.bf16.mxu0 0
        %875 = vmatpush1.bf16.msra.mxu0 0
        %876 = vmatprep.subr.bf16.mxu0 0
        %877 = vmatpush1.bf16.msra.mxu0 0
        %878 = vmatprep.subr.bf16.mxu0 0
        %879 = vmatpush1.bf16.msra.mxu0 0
        %880 = vmatprep.subr.bf16.mxu0 0
        %881 = vmatpush1.bf16.msra.mxu0 0
        %882 = vmatprep.subr.bf16.mxu0 0
        %883 = vmatpush1.bf16.msra.mxu0 0
        %884 = vmatprep.subr.bf16.mxu0 0
        %885 = vmatpush1.bf16.msra.mxu0 0
        %886 = vmatprep.subr.bf16.mxu0 0
        %887 = vmatpush1.bf16.msra.mxu0 0
        %888 = vmatprep.subr.bf16.mxu0 0
        %889 = vmatpush1.bf16.msra.mxu0 0
        %890 = vmatprep.subr.bf16.mxu0 0
        %891 = vmatpush1.bf16.msra.mxu0 0
        %892 = vmatprep.subr.bf16.mxu0 0
        %893 = vmatpush1.bf16.msra.mxu0 0
        %894 = vmatprep.subr.bf16.mxu0 0
        %895 = vmatpush1.bf16.msra.mxu0 0
        %896 = vmatprep.subr.bf16.mxu0 0
        %897 = vmatpush1.bf16.msra.mxu0 0
        %898 = vmatprep.mubr.bf16.mxu0 0
        %899 = vmatmul.mubr.bf16.gmra.mrb[0].mxu0 %v861
        %v900 = vpop.f32.mrb[0].mxu0
        %v901 = vadd.f32 0.0, %v900
        %v902 = vpop.f32.mrb[0].mxu0
        %v903 = vpop.f32.mrb[0].mxu0
        %v904 = vpop.f32.mrb[0].mxu0
        %905 = vdwg.mxu0
        %v906 = vpack.c.bf16 %v901, %v901
        %v907 = vld [vmem:[#allocation12 + $0x4] sm:$0xf]
        %v909 = vsel %vm677, %v906, 0
        %v912 = vsel %vm741, %v907, 0
        %914 = vmatprep.subr.bf16.mxu0 0
        %915 = vmatpush1.bf16.msra.mxu0 %v912
        %916 = vmatprep.subr.bf16.mxu0 0
        %917 = vmatpush1.bf16.msra.mxu0 0
        %918 = vmatprep.subr.bf16.mxu0 0
        %919 = vmatpush1.bf16.msra.mxu0 0
        %920 = vmatprep.subr.bf16.mxu0 0
        %921 = vmatpush1.bf16.msra.mxu0 0
        %922 = vmatprep.subr.bf16.mxu0 0
        %923 = vmatpush1.bf16.msra.mxu0 0
        %924 = vmatprep.subr.bf16.mxu0 0
        %925 = vmatpush1.bf16.msra.mxu0 0
        %926 = vmatprep.subr.bf16.mxu0 0
        %927 = vmatpush1.bf16.msra.mxu0 0
        %928 = vmatprep.subr.bf16.mxu0 0
        %929 = vmatpush1.bf16.msra.mxu0 0
        %930 = vmatprep.subr.bf16.mxu0 0
        %931 = vmatpush1.bf16.msra.mxu0 0
        %932 = vmatprep.subr.bf16.mxu0 0
        %933 = vmatpush1.bf16.msra.mxu0 0
        %934 = vmatprep.subr.bf16.mxu0 0
        %935 = vmatpush1.bf16.msra.mxu0 0
        %936 = vmatprep.subr.bf16.mxu0 0
        %937 = vmatpush1.bf16.msra.mxu0 0
        %938 = vmatprep.subr.bf16.mxu0 0
        %939 = vmatpush1.bf16.msra.mxu0 0
        %940 = vmatprep.subr.bf16.mxu0 0
        %941 = vmatpush1.bf16.msra.mxu0 0
        %942 = vmatprep.subr.bf16.mxu0 0
        %943 = vmatpush1.bf16.msra.mxu0 0
        %944 = vmatprep.subr.bf16.mxu0 0
        %945 = vmatpush1.bf16.msra.mxu0 0
        %946 = vmatprep.mubr.bf16.mxu0 0
        %947 = vmatmul.mubr.bf16.gmra.mrb[0].mxu0 %v909
        %v948 = vpop.f32.mrb[0].mxu0
        %v949 = vadd.f32 0.0, %v948
        %v950 = vpop.f32.mrb[0].mxu0
        %v951 = vpop.f32.mrb[0].mxu0
        %v952 = vpop.f32.mrb[0].mxu0
        %953 = vdwg.mxu0
        %v955 = vsel %vm677, %v785, 0
        %v958 = vsel %vm741, %v786, 0
        %960 = vmatprep.subr.bf16.mxu0 0
        %961 = vmatpush1.bf16.msra.mxu0 %v958
        %962 = vmatprep.subr.bf16.mxu0 0
        %963 = vmatpush1.bf16.msra.mxu0 0
        %964 = vmatprep.subr.bf16.mxu0 0
        %965 = vmatpush1.bf16.msra.mxu0 0
        %966 = vmatprep.subr.bf16.mxu0 0
        %967 = vmatpush1.bf16.msra.mxu0 0
        %968 = vmatprep.subr.bf16.mxu0 0
        %969 = vmatpush1.bf16.msra.mxu0 0
        %970 = vmatprep.subr.bf16.mxu0 0
        %971 = vmatpush1.bf16.msra.mxu0 0
        %972 = vmatprep.subr.bf16.mxu0 0
        %973 = vmatpush1.bf16.msra.mxu0 0
        %974 = vmatprep.subr.bf16.mxu0 0
        %975 = vmatpush1.bf16.msra.mxu0 0
        %976 = vmatprep.subr.bf16.mxu0 0
        %977 = vmatpush1.bf16.msra.mxu0 0
        %978 = vmatprep.subr.bf16.mxu0 0
        %979 = vmatpush1.bf16.msra.mxu0 0
        %980 = vmatprep.subr.bf16.mxu0 0
        %981 = vmatpush1.bf16.msra.mxu0 0
        %982 = vmatprep.subr.bf16.mxu0 0
        %983 = vmatpush1.bf16.msra.mxu0 0
        %984 = vmatprep.subr.bf16.mxu0 0
        %985 = vmatpush1.bf16.msra.mxu0 0
        %986 = vmatprep.subr.bf16.mxu0 0
        %987 = vmatpush1.bf16.msra.mxu0 0
        %988 = vmatprep.subr.bf16.mxu0 0
        %989 = vmatpush1.bf16.msra.mxu0 0
        %990 = vmatprep.subr.bf16.mxu0 0
        %991 = vmatpush1.bf16.msra.mxu0 0
        %992 = vmatprep.mubr.bf16.mxu0 0
        %993 = vmatmul.mubr.bf16.gmra.mrb[0].mxu0 %v955
        %v994 = vpop.f32.mrb[0].mxu0
        %v995 = vadd.f32 %v949, %v994
        %v996 = vpop.f32.mrb[0].mxu0
        %v997 = vpop.f32.mrb[0].mxu0
        %v998 = vpop.f32.mrb[0].mxu0
        %999 = vdwg.mxu0
        %1000 = vrot.lane.b32.xlu0 %v674, 112
        %v1001 = vpop.permute.xlu0 %1000
        %1002 = vrot.lane.b32.xlu0 %v792, 112
        %v1003 = vpop.permute.xlu0 %1002
        %v1005 = vsel %vm677, %v1001, 0
        %v1008 = vsel %vm677, %v1003, 0
        %1010 = vmatprep.subr.bf16.mxu0 0
        %1011 = vmatpush1.bf16.xpose.msra.mxu0 %v1008
        %1012 = vmatprep.subr.bf16.mxu0 0
        %1013 = vmatpush1.bf16.xpose.msra.mxu0 0
        %1014 = vmatprep.subr.bf16.mxu0 0
        %1015 = vmatpush1.bf16.xpose.msra.mxu0 0
        %1016 = vmatprep.subr.bf16.mxu0 0
        %1017 = vmatpush1.bf16.xpose.msra.mxu0 0
        %1018 = vmatprep.subr.bf16.mxu0 0
        %1019 = vmatpush1.bf16.xpose.msra.mxu0 0
        %1020 = vmatprep.subr.bf16.mxu0 0
        %1021 = vmatpush1.bf16.xpose.msra.mxu0 0
        %1022 = vmatprep.subr.bf16.mxu0 0
        %1023 = vmatpush1.bf16.xpose.msra.mxu0 0
        %1024 = vmatprep.subr.bf16.mxu0 0
        %1025 = vmatpush1.bf16.xpose.msra.mxu0 0
        %1026 = vmatprep.subr.bf16.mxu0 0
        %1027 = vmatpush1.bf16.xpose.msra.mxu0 0
        %1028 = vmatprep.subr.bf16.mxu0 0
        %1029 = vmatpush1.bf16.xpose.msra.mxu0 0
        %1030 = vmatprep.subr.bf16.mxu0 0
        %1031 = vmatpush1.bf16.xpose.msra.mxu0 0
        %1032 = vmatprep.subr.bf16.mxu0 0
        %1033 = vmatpush1.bf16.xpose.msra.mxu0 0
        %1034 = vmatprep.subr.bf16.mxu0 0
        %1035 = vmatpush1.bf16.xpose.msra.mxu0 0
        %1036 = vmatprep.subr.bf16.mxu0 0
        %1037 = vmatpush1.bf16.xpose.msra.mxu0 0
        %1038 = vmatprep.subr.bf16.mxu0 0
        %1039 = vmatpush1.bf16.xpose.msra.mxu0 0
        %1040 = vmatprep.subr.bf16.mxu0 0
        %1041 = vmatpush1.bf16.xpose.msra.mxu0 0
        %1042 = vmatprep.mubr.bf16.mxu0 0
        %1043 = vmatmul.mubr.bf16.gmra.mrb[0].mxu0 %v1005
        %v1044 = vpop.f32.mrb[0].mxu0
        %v1045 = vadd.f32 0.0, %v1044
        %v1046 = vpop.f32.mrb[0].mxu0
        %v1047 = vpop.f32.mrb[0].mxu0
        %v1048 = vpop.f32.mrb[0].mxu0
        %1049 = vdwg.mxu0
        %v1050 = vsel %vm677, %v1045, -inf
        %1051 = vmax.xlane.f32.xlu0 %v1050
        %v1052 = vpop.xlane.xlu0 %1051
        %v1053 = vsub.f32 %v1045, %v1052
        %v1054 = vmul.f32 %v1053, 1.442695
        %v1055 = vpow.pop %v1054
        %v1056 = vsel %vm677, %v1055, 0.0
        %1057 = vadd.xlane.f32.xlu0 %v1056
        %v1058 = vpop.xlane.xlu0 %1057
        %v1059 = vrcp.pop %v1058
        %v1060 = vmul.f32 %v1055, %v1059
        %v1061 = vpack.c.bf16 %v1060, %v1060
        %s1062 = scalar_lea.vmem %s459, 8 [#allocation14]
        %1063 = vst.msk [vmem:[%s1062] sm:$0xf] %vm736, %v1061
        %1064 = vrot.lane.b32.xlu0 %v857, 112
        %v1065 = vpop.permute.xlu0 %1064
        %v1067 = vsel %vm677, %v1061, 0
        %v1070 = vsel %vm741, %v1065, 0
        %1072 = vmatprep.subr.bf16.mxu0 0
        %1073 = vmatpush1.bf16.msra.mxu0 %v1070
        %1074 = vmatprep.subr.bf16.mxu0 0
        %1075 = vmatpush1.bf16.msra.mxu0 0
        %1076 = vmatprep.subr.bf16.mxu0 0
        %1077 = vmatpush1.bf16.msra.mxu0 0
        %1078 = vmatprep.subr.bf16.mxu0 0
        %1079 = vmatpush1.bf16.msra.mxu0 0
        %1080 = vmatprep.subr.bf16.mxu0 0
        %1081 = vmatpush1.bf16.msra.mxu0 0
        %1082 = vmatprep.subr.bf16.mxu0 0
        %1083 = vmatpush1.bf16.msra.mxu0 0
        %1084 = vmatprep.subr.bf16.mxu0 0
        %1085 = vmatpush1.bf16.msra.mxu0 0
        %1086 = vmatprep.subr.bf16.mxu0 0
        %1087 = vmatpush1.bf16.msra.mxu0 0
        %1088 = vmatprep.subr.bf16.mxu0 0
        %1089 = vmatpush1.bf16.msra.mxu0 0
        %1090 = vmatprep.subr.bf16.mxu0 0
        %1091 = vmatpush1.bf16.msra.mxu0 0
        %1092 = vmatprep.subr.bf16.mxu0 0
        %1093 = vmatpush1.bf16.msra.mxu0 0
        %1094 = vmatprep.subr.bf16.mxu0 0
        %1095 = vmatpush1.bf16.msra.mxu0 0
        %1096 = vmatprep.subr.bf16.mxu0 0
        %1097 = vmatpush1.bf16.msra.mxu0 0
        %1098 = vmatprep.subr.bf16.mxu0 0
        %1099 = vmatpush1.bf16.msra.mxu0 0
        %1100 = vmatprep.subr.bf16.mxu0 0
        %1101 = vmatpush1.bf16.msra.mxu0 0
        %1102 = vmatprep.subr.bf16.mxu0 0
        %1103 = vmatpush1.bf16.msra.mxu0 0
        %1104 = vmatprep.mubr.bf16.mxu0 0
        %1105 = vmatmul.mubr.bf16.gmra.mrb[0].mxu0 %v1067
        %v1106 = vpop.f32.mrb[0].mxu0
        %v1107 = vadd.f32 0.0, %v1106
        %v1108 = vpop.f32.mrb[0].mxu0
        %v1109 = vpop.f32.mrb[0].mxu0
        %v1110 = vpop.f32.mrb[0].mxu0
        %1111 = vdwg.mxu0
        %v1112 = vpack.c.bf16 %v1107, %v1107
        %v1113 = vld [vmem:[#allocation12 + $0x8] sm:$0xf]
        %v1115 = vsel %vm677, %v1112, 0
        %v1118 = vsel %vm741, %v1113, 0
        %1120 = vmatprep.subr.bf16.mxu0 0
        %1121 = vmatpush1.bf16.msra.mxu0 %v1118
        %1122 = vmatprep.subr.bf16.mxu0 0
        %1123 = vmatpush1.bf16.msra.mxu0 0
        %1124 = vmatprep.subr.bf16.mxu0 0
        %1125 = vmatpush1.bf16.msra.mxu0 0
        %1126 = vmatprep.subr.bf16.mxu0 0
        %1127 = vmatpush1.bf16.msra.mxu0 0
        %1128 = vmatprep.subr.bf16.mxu0 0
        %1129 = vmatpush1.bf16.msra.mxu0 0
        %1130 = vmatprep.subr.bf16.mxu0 0
        %1131 = vmatpush1.bf16.msra.mxu0 0
        %1132 = vmatprep.subr.bf16.mxu0 0
        %1133 = vmatpush1.bf16.msra.mxu0 0
        %1134 = vmatprep.subr.bf16.mxu0 0
        %1135 = vmatpush1.bf16.msra.mxu0 0
        %1136 = vmatprep.subr.bf16.mxu0 0
        %1137 = vmatpush1.bf16.msra.mxu0 0
        %1138 = vmatprep.subr.bf16.mxu0 0
        %1139 = vmatpush1.bf16.msra.mxu0 0
        %1140 = vmatprep.subr.bf16.mxu0 0
        %1141 = vmatpush1.bf16.msra.mxu0 0
        %1142 = vmatprep.subr.bf16.mxu0 0
        %1143 = vmatpush1.bf16.msra.mxu0 0
        %1144 = vmatprep.subr.bf16.mxu0 0
        %1145 = vmatpush1.bf16.msra.mxu0 0
        %1146 = vmatprep.subr.bf16.mxu0 0
        %1147 = vmatpush1.bf16.msra.mxu0 0
        %1148 = vmatprep.subr.bf16.mxu0 0
        %1149 = vmatpush1.bf16.msra.mxu0 0
        %1150 = vmatprep.subr.bf16.mxu0 0
        %1151 = vmatpush1.bf16.msra.mxu0 0
        %1152 = vmatprep.mubr.bf16.mxu0 0
        %1153 = vmatmul.mubr.bf16.gmra.mrb[0].mxu0 %v1115
        %v1154 = vpop.f32.mrb[0].mxu0
        %v1155 = vadd.f32 0.0, %v1154
        %v1156 = vpop.f32.mrb[0].mxu0
        %v1157 = vpop.f32.mrb[0].mxu0
        %v1158 = vpop.f32.mrb[0].mxu0
        %1159 = vdwg.mxu0
        %v1160 = vadd.f32 %v995, %v1155
        %1161 = vrot.lane.b32.xlu0 %v674, 104
        %v1162 = vpop.permute.xlu0 %1161
        %1163 = vrot.lane.b32.xlu0 %v792, 104
        %v1164 = vpop.permute.xlu0 %1163
        %v1166 = vsel %vm677, %v1162, 0
        %v1169 = vsel %vm677, %v1164, 0
        %1171 = vmatprep.subr.bf16.mxu0 0
        %1172 = vmatpush1.bf16.xpose.msra.mxu0 %v1169
        %1173 = vmatprep.subr.bf16.mxu0 0
        %1174 = vmatpush1.bf16.xpose.msra.mxu0 0
        %1175 = vmatprep.subr.bf16.mxu0 0
        %1176 = vmatpush1.bf16.xpose.msra.mxu0 0
        %1177 = vmatprep.subr.bf16.mxu0 0
        %1178 = vmatpush1.bf16.xpose.msra.mxu0 0
        %1179 = vmatprep.subr.bf16.mxu0 0
        %1180 = vmatpush1.bf16.xpose.msra.mxu0 0
        %1181 = vmatprep.subr.bf16.mxu0 0
        %1182 = vmatpush1.bf16.xpose.msra.mxu0 0
        %1183 = vmatprep.subr.bf16.mxu0 0
        %1184 = vmatpush1.bf16.xpose.msra.mxu0 0
        %1185 = vmatprep.subr.bf16.mxu0 0
        %1186 = vmatpush1.bf16.xpose.msra.mxu0 0
        %1187 = vmatprep.subr.bf16.mxu0 0
        %1188 = vmatpush1.bf16.xpose.msra.mxu0 0
        %1189 = vmatprep.subr.bf16.mxu0 0
        %1190 = vmatpush1.bf16.xpose.msra.mxu0 0
        %1191 = vmatprep.subr.bf16.mxu0 0
        %1192 = vmatpush1.bf16.xpose.msra.mxu0 0
        %1193 = vmatprep.subr.bf16.mxu0 0
        %1194 = vmatpush1.bf16.xpose.msra.mxu0 0
        %1195 = vmatprep.subr.bf16.mxu0 0
        %1196 = vmatpush1.bf16.xpose.msra.mxu0 0
        %1197 = vmatprep.subr.bf16.mxu0 0
        %1198 = vmatpush1.bf16.xpose.msra.mxu0 0
        %1199 = vmatprep.subr.bf16.mxu0 0
        %1200 = vmatpush1.bf16.xpose.msra.mxu0 0
        %1201 = vmatprep.subr.bf16.mxu0 0
        %1202 = vmatpush1.bf16.xpose.msra.mxu0 0
        %1203 = vmatprep.mubr.bf16.mxu0 0
        %1204 = vmatmul.mubr.bf16.gmra.mrb[0].mxu0 %v1166
        %v1205 = vpop.f32.mrb[0].mxu0
        %v1206 = vadd.f32 0.0, %v1205
        %v1207 = vpop.f32.mrb[0].mxu0
        %v1208 = vpop.f32.mrb[0].mxu0
        %v1209 = vpop.f32.mrb[0].mxu0
        %1210 = vdwg.mxu0
        %v1211 = vsel %vm677, %v1206, -inf
        %1212 = vmax.xlane.f32.xlu0 %v1211
        %v1213 = vpop.xlane.xlu0 %1212
        %v1214 = vsub.f32 %v1206, %v1213
        %v1215 = vmul.f32 %v1214, 1.442695
        %v1216 = vpow.pop %v1215
        %v1217 = vsel %vm677, %v1216, 0.0
        %1218 = vadd.xlane.f32.xlu0 %v1217
        %v1219 = vpop.xlane.xlu0 %1218
        %v1220 = vrcp.pop %v1219
        %v1221 = vmul.f32 %v1216, %v1220
        %v1222 = vpack.c.bf16 %v1221, %v1221
        %s1223 = scalar_lea.vmem %s459, 12 [#allocation14]
        %1224 = vst.msk [vmem:[%s1223] sm:$0xf] %vm736, %v1222
        %1225 = vrot.lane.b32.xlu0 %v857, 104
        %v1226 = vpop.permute.xlu0 %1225
        %v1228 = vsel %vm677, %v1222, 0
        %v1231 = vsel %vm741, %v1226, 0
        %1233 = vmatprep.subr.bf16.mxu0 0
        %1234 = vmatpush1.bf16.msra.mxu0 %v1231
        %1235 = vmatprep.subr.bf16.mxu0 0
        %1236 = vmatpush1.bf16.msra.mxu0 0
        %1237 = vmatprep.subr.bf16.mxu0 0
        %1238 = vmatpush1.bf16.msra.mxu0 0
        %1239 = vmatprep.subr.bf16.mxu0 0
        %1240 = vmatpush1.bf16.msra.mxu0 0
        %1241 = vmatprep.subr.bf16.mxu0 0
        %1242 = vmatpush1.bf16.msra.mxu0 0
        %1243 = vmatprep.subr.bf16.mxu0 0
        %1244 = vmatpush1.bf16.msra.mxu0 0
        %1245 = vmatprep.subr.bf16.mxu0 0
        %1246 = vmatpush1.bf16.msra.mxu0 0
        %1247 = vmatprep.subr.bf16.mxu0 0
        %1248 = vmatpush1.bf16.msra.mxu0 0
        %1249 = vmatprep.subr.bf16.mxu0 0
        %1250 = vmatpush1.bf16.msra.mxu0 0
        %1251 = vmatprep.subr.bf16.mxu0 0
        %1252 = vmatpush1.bf16.msra.mxu0 0
        %1253 = vmatprep.subr.bf16.mxu0 0
        %1254 = vmatpush1.bf16.msra.mxu0 0
        %1255 = vmatprep.subr.bf16.mxu0 0
        %1256 = vmatpush1.bf16.msra.mxu0 0
        %1257 = vmatprep.subr.bf16.mxu0 0
        %1258 = vmatpush1.bf16.msra.mxu0 0
        %1259 = vmatprep.subr.bf16.mxu0 0
        %1260 = vmatpush1.bf16.msra.mxu0 0
        %1261 = vmatprep.subr.bf16.mxu0 0
        %1262 = vmatpush1.bf16.msra.mxu0 0
        %1263 = vmatprep.subr.bf16.mxu0 0
        %1264 = vmatpush1.bf16.msra.mxu0 0
        %1265 = vmatprep.mubr.bf16.mxu0 0
        %1266 = vmatmul.mubr.bf16.gmra.mrb[0].mxu0 %v1228
        %v1267 = vpop.f32.mrb[0].mxu0
        %v1268 = vadd.f32 0.0, %v1267
        %v1269 = vpop.f32.mrb[0].mxu0
        %v1270 = vpop.f32.mrb[0].mxu0
        %v1271 = vpop.f32.mrb[0].mxu0
        %1272 = vdwg.mxu0
        %v1273 = vpack.c.bf16 %v1268, %v1268
        %v1274 = vld [vmem:[#allocation12 + $0xc] sm:$0xf]
        %v1276 = vsel %vm677, %v1273, 0
        %v1279 = vsel %vm741, %v1274, 0
        %1281 = vmatprep.subr.bf16.mxu0 0
        %1282 = vmatpush1.bf16.msra.mxu0 %v1279
        %1283 = vmatprep.subr.bf16.mxu0 0
        %1284 = vmatpush1.bf16.msra.mxu0 0
        %1285 = vmatprep.subr.bf16.mxu0 0
        %1286 = vmatpush1.bf16.msra.mxu0 0
        %1287 = vmatprep.subr.bf16.mxu0 0
        %1288 = vmatpush1.bf16.msra.mxu0 0
        %1289 = vmatprep.subr.bf16.mxu0 0
        %1290 = vmatpush1.bf16.msra.mxu0 0
        %1291 = vmatprep.subr.bf16.mxu0 0
        %1292 = vmatpush1.bf16.msra.mxu0 0
        %1293 = vmatprep.subr.bf16.mxu0 0
        %1294 = vmatpush1.bf16.msra.mxu0 0
        %1295 = vmatprep.subr.bf16.mxu0 0
        %1296 = vmatpush1.bf16.msra.mxu0 0
        %1297 = vmatprep.subr.bf16.mxu0 0
        %1298 = vmatpush1.bf16.msra.mxu0 0
        %1299 = vmatprep.subr.bf16.mxu0 0
        %1300 = vmatpush1.bf16.msra.mxu0 0
        %1301 = vmatprep.subr.bf16.mxu0 0
        %1302 = vmatpush1.bf16.msra.mxu0 0
        %1303 = vmatprep.subr.bf16.mxu0 0
        %1304 = vmatpush1.bf16.msra.mxu0 0
        %1305 = vmatprep.subr.bf16.mxu0 0
        %1306 = vmatpush1.bf16.msra.mxu0 0
        %1307 = vmatprep.subr.bf16.mxu0 0
        %1308 = vmatpush1.bf16.msra.mxu0 0
        %1309 = vmatprep.subr.bf16.mxu0 0
        %1310 = vmatpush1.bf16.msra.mxu0 0
        %1311 = vmatprep.subr.bf16.mxu0 0
        %1312 = vmatpush1.bf16.msra.mxu0 0
        %1313 = vmatprep.mubr.bf16.mxu0 0
        %1314 = vmatmul.mubr.bf16.gmra.mrb[0].mxu0 %v1276
        %v1315 = vpop.f32.mrb[0].mxu0
        %v1316 = vadd.f32 0.0, %v1315
        %v1317 = vpop.f32.mrb[0].mxu0
        %v1318 = vpop.f32.mrb[0].mxu0
        %v1319 = vpop.f32.mrb[0].mxu0
        %1320 = vdwg.mxu0
        %v1321 = vadd.f32 %v1160, %v1316
        %v1322 = vld [vmem:[%s8] sm:$0x1]
        %v1324 = vlaneseq
        %v1325 = vshrl.u32 %v1324, 7
        %v1326 = vsub.s32 0, %v1325
        %v1327 = vrot.slane %v1322, %v1326
        %v1329 = vadd.f32 %v1321, %v1327
        %1330 = vst.msk [vmem:[%s452] sm:$0xff] %vm630, %v1329
        %s1331 = sand.u32 %s249, 1
        %s1332 = scalar_lea.sflag [#allocation6], %s1331
        %s1333 = sand.u32 %s249, 1
        %s1334 = smul.addr %s1333, 8
        %s1335 = scalar_lea.vmem [#allocation13], %s1334
        %s1336 = sand.u32 %s277, 1
        %s1337 = scalar_lea.sflag [#allocation15], %s1336
        %s1338 = sand.u32 %s277, 1
        %s1339 = smul.addr %s1338, 16
        %s1340 = scalar_lea.vmem [#allocation14], %s1339
        // Predicated region
        $region81: #{tpu_custom_call.1} parent=55 // pred_check
          %p1341 = pneg %p259
        $region82: #{tpu_custom_call.1} parent=55 // pred_check_branch
          %1343 = sbr.rel (%p1341) target = $region84
        $region83: #{tpu_custom_call.1} parent=55 // pred_region
          %s1345 = ssub.s32 128, 128
          %1346 = vsyncadd %s1332, %s1345
          %s1347 = sadd.s32 %s38, %s37
          %s1348 = smul.addr %s1347, 128
          %s1349 = scalar_lea.hbm %s9, %s1348
          %s1351 = sshll.u32 %s1335, 4
          %s1352 = int_to_ptr.vmem [resolvable:$true] %s1351
          %1354 = dma.vmem_to_hbm [thread:$0]  %s1352, 128, %s1349, %s1332
        $region84: #{tpu_custom_call.1} parent=55 // pred_fallthru
          _
        // Predicated region
        $region85: #{tpu_custom_call.1} parent=55 // pred_check
          %p1355 = pneg %p287
        $region86: #{tpu_custom_call.1} parent=55 // pred_check_branch
          %1357 = sbr.rel (%p1355) target = $region88
        $region87: #{tpu_custom_call.1} parent=55 // pred_region
          %s1359 = ssub.s32 256, 256
          %1360 = vsyncadd %s1337, %s1359
          %s1361 = smul.addr %s37, 4
          %s1362 = sadd.s32 %s38, %s1361
          %s1363 = smul.addr %s1362, 64
          %s1364 = scalar_lea.hbm %s10, %s1363
          %s1365 = sshll.u32 %s1340, 4
          %s1366 = int_to_ptr.vmem [resolvable:$true] %s1365
          %1371 = dma.vmem_to_hbm [thread:$0]  %s1366, 256, %s1364, %s1337, 64, 64, 4
        $region88: #{tpu_custom_call.1} parent=55 // pred_fallthru
          _
      $region56: #{tpu_custom_call.1} parent=5 // pred_fallthru
        _
      %p1372 = scmp.le.s32.totalorder 2, %s28
      // Predicated region
      $region89: #{tpu_custom_call.1} parent=5 // pred_check
        %p1373 = pneg %p1372
      $region90: #{tpu_custom_call.1} parent=5 // pred_check_branch
        %1375 = sbr.rel (%p1373) target = $region92
      $region91: #{tpu_custom_call.1} parent=5 // pred_region
        %s1376 = ssub.s32 %s28, 2
        // Predicated region
        $region93: #{tpu_custom_call.1} parent=91 // pred_check
          %p1377 = pneg %p265
        $region94: #{tpu_custom_call.1} parent=91 // pred_check_branch
          %1379 = sbr.rel (%p1377) target = $region96
        $region95: #{tpu_custom_call.1} parent=91 // pred_region
          %s1380 = sand.u32 %s250, 1
          %s1381 = scalar_lea.sflag [#allocation6], %s1380
          %s1382 = sand.u32 %s250, 1
          %s1383 = smul.addr %s1382, 8
          %s1384 = scalar_lea.vmem [#allocation13], %s1383
          %1385 = dma.done %s1381, 128
        $region96: #{tpu_custom_call.1} parent=91 // pred_fallthru
          _
        // Predicated region
        $region97: #{tpu_custom_call.1} parent=91 // pred_check
          %p1386 = pneg %p293
        $region98: #{tpu_custom_call.1} parent=91 // pred_check_branch
          %1388 = sbr.rel (%p1386) target = $region100
        $region99: #{tpu_custom_call.1} parent=91 // pred_region
          %s1389 = sand.u32 %s278, 1
          %s1390 = scalar_lea.sflag [#allocation15], %s1389
          %s1391 = sand.u32 %s278, 1
          %s1392 = smul.addr %s1391, 16
          %s1393 = scalar_lea.vmem [#allocation14], %s1392
          %1394 = dma.done %s1390, 256
        $region100: #{tpu_custom_call.1} parent=91 // pred_fallthru
          _
      $region92: #{tpu_custom_call.1} parent=5 // pred_fallthru
        _
    $region6: #{tpu_custom_call.1} parent=1 // loop_footer
      %s32 = sadd.s32 1, %s28
    $region7: #{tpu_custom_call.1} parent=1 // loop_footer_branch
      %27 = sbr.rel target = $region3
    $region8: #{tpu_custom_call.1} parent=1 // loop_exit
      _
    %1395 = vsyncpa [#allocation5], 1
    %s1396 = scalar_lea.sflag [#allocation5], 1
    %1397 = vsyncpa %s1396, 1
    %1398 = vsyncpa [#allocation8], 1
    %1399 = vsyncpa [#allocation11], 1
    %1400 = vsyncpa [#allocation6], 1
    %s1401 = scalar_lea.sflag [#allocation6], 1
    %1402 = vsyncpa %s1401, 1
    %1403 = vsyncpa [#allocation15], 1
    %s1404 = scalar_lea.sflag [#allocation15], 1
    %1405 = vsyncpa %s1404, 1

</llo_original>
